<compile_context>
chip_gen: v7x
topology: tpu7x:2x2x1
jax: 0.10.0
libtpu: 0.0.40
codegen_flags: <defaults>
</compile_context>

<pallas_src>
import functools
import math

import jax
import jax.numpy as jnp
from jax import lax
from jax.experimental import pallas as pl
from jax.experimental.pallas import tpu as pltpu


def rnn_gmm_kernel(
    xc_ref,     # (bt, D_in)        classifier input (f32)
    w1_ref,     # (D_in, H1)        MLP layer 1 (bf16)
    w2_ref,     # (H1, H2)          MLP layer 2 (bf16)
    w3_ref,     # (H2, C)           MLP output head (bf16)
    packw_ref,  # (C, LANES)        [I_C | means | 0] packing matrix (f32)
    utp_ref,    # (LANES, Np)       U.T at rows C:C+nbg, zeros elsewhere (f32)
    jt_ref,     # (Np, Np)          recurrent weights pre-transposed J.T (bf16)
    x0_ref,     # (bt, Np)          initial hidden state (f32)
    small_ref,  # (bt, LANES)   out: [cluster_probs | bg_act | 0] slab (f32)
    rh_ref,     # (tc, bt, Np)  out: r_hidden chunk (f32)
    ra_ref,     # (tc, bt, Np)  out: r_act chunk (act_dtype)
    x_sc,       # (bt, Np)   scratch: state x, carried across T-chunks (f32)
    r_sc,       # (bt, Np)   scratch: tanh(x) (f32)
    ag_sc,      # (bt, Np)   scratch: alpha * gain (f32)
    slab_sc,    # (bt, LANES) scratch: [probs | bg | 0] slab (f32)
    *,
    dt: float,
    tau: float,
    t_chunk: int,
    act_dtype,
):
    f32, bf16 = jnp.float32, jnp.bfloat16
    alpha = dt / tau
    tci = pl.program_id(1)               # T-chunk index (inner, "arbitrary")

    @pl.when(tci == 0)
    def _init():
        # ---- classifier MLP (bias-free Linear + ReLU hiddens, linear head) --
        h1 = jnp.maximum(
            jnp.dot(xc_ref[...].astype(bf16), w1_ref[...],
                    preferred_element_type=f32), 0.0)
        h2 = jnp.maximum(
            jnp.dot(h1.astype(bf16), w2_ref[...],
                    preferred_element_type=f32), 0.0)
        logits = jnp.dot(h2.astype(bf16), w3_ref[...],
                         preferred_element_type=f32)

        # ---- softmax over classes; exact division (one-time cost) ----------
        m = jnp.max(logits, axis=-1, keepdims=True)
        e = jnp.exp(logits - m)
        probs = e / jnp.sum(e, axis=-1, keepdims=True)

        # ---- lane-dense packing + GMM mean mixture in ONE matmul -----------
        # packw = [I_C | means | 0]  =>  slab = [probs | probs@means | 0]
        slab = jnp.dot(probs, packw_ref[...], preferred_element_type=f32)
        slab_sc[...] = slab

        # ---- per-neuron multiplicative gain from BG output (f32, one-time) -
        # utp has U.T in rows C:C+nbg and zeros elsewhere -> slab@utp == bg@U.T
        gain = 1.0 + jnp.dot(slab, utp_ref[...], preferred_element_type=f32)
        ag_sc[...] = alpha * gain        # fold alpha into the gain (hoisted)

        x0 = x0_ref[...]
        x_sc[...] = x0
        r_sc[...] = jnp.tanh(x0)

    # Lane-dense unmasked store of the small outputs every grid step (cheap;
    # avoids relying on output-buffer revisit persistence for a pl.when write).
    small_ref[...] = slab_sc[...]

    one_minus_alpha = 1.0 - alpha
    ag = ag_sc[...]

    # ---- leaky RNN rollout chunk: x' = (1-a)*x + a*gain*(tanh(x) @ J.T) -----
    # (x, r=tanh(x)) carried through the loop -> exactly one tanh per step.
    def step(i, carry):
        x, r = carry
        rec = jnp.dot(r.astype(bf16), jt_ref[...], preferred_element_type=f32)
        x_new = one_minus_alpha * x + ag * rec
        r_new = jnp.tanh(x_new)
        rh_ref[i] = x_new
        ra_ref[i] = r_new.astype(act_dtype)
        return (x_new, r_new)

    # Only one T-chunk is unrolled per grid step (capped unroll).
    x_fin, r_fin = lax.fori_loop(0, t_chunk, step, (x_sc[...], r_sc[...]),
                                 unroll=True)
    x_sc[...] = x_fin
    r_sc[...] = r_fin


def _round_up(x, m):
    return ((x + m - 1) // m) * m


def rnn_gmm_forward(xc, w1, w2, w3, means, J, U, x0, *, dt=0.05, tau=0.15,
                    n_steps=8, batch_tile=8, t_chunk=4,
                    act_dtype=jnp.bfloat16, batch_major=False):
    f32, bf16 = jnp.float32, jnp.bfloat16
    B, d_in = xc.shape
    N = J.shape[0]
    C = w3.shape[1]
    nbg = means.shape[1]

    # ---- pad to TPU-friendly extents (lane-dense stores, whole tiles) -------
    Np = _round_up(N, 128)                       # lane axis of state / rh / ra
    bt = batch_tile
    Bp = _round_up(B, bt)
    tc = min(t_chunk, n_steps)
    Tp = _round_up(n_steps, tc)
    lanes = max(128, _round_up(C + nbg, 128))    # lane-dense slab width

    xc_p = jnp.zeros((Bp, d_in), f32).at[:B].set(xc.astype(f32))
    x0_p = jnp.zeros((Bp, Np), f32).at[:B, :N].set(x0.astype(f32))
    J_p = jnp.zeros((Np, Np), f32).at[:N, :N].set(J.astype(f32))
    U_p = jnp.zeros((Np, nbg), f32).at[:N].set(U.astype(f32))

    # MXU operands for the per-step recurrence in bf16; one-shot matmuls that
    # feed the multiplicative gain stay f32. Elementwise state math stays f32.
    w1b, w2b, w3b = w1.astype(bf16), w2.astype(bf16), w3.astype(bf16)
    jt = J_p.T.astype(bf16)                      # row-major r @ J.T on the MXU

    # packing matrix: probs @ [I_C | means | 0] -> [probs | bg | 0]   (f32)
    packw = jnp.zeros((C, lanes), f32)
    packw = packw.at[:, :C].set(jnp.eye(C, dtype=f32))
    packw = packw.at[:, C:C + nbg].set(means.astype(f32))
    # U.T at rows C:C+nbg so the padded slab drives the gain matmul directly.
    utp = jnp.zeros((lanes, Np), f32).at[C:C + nbg, :].set(U_p.T)

    kernel = functools.partial(rnn_gmm_kernel, dt=dt, tau=tau, t_chunk=tc,
                               act_dtype=act_dtype)

    n_bt = Bp // bt
    n_tc = Tp // tc
    inputs = (xc_p, w1b, w2b, w3b, packw, utp, jt, x0_p)

    def fixed(arr):                              # grid-invariant full-array spec
        nd = arr.ndim
        return pl.BlockSpec(arr.shape, lambda b, t, _nd=nd: (0,) * _nd)

    in_specs = [
        pl.BlockSpec((bt, d_in), lambda b, t: (b, 0)),      # xc   (batch-tiled)
        fixed(w1b), fixed(w2b), fixed(w3b),
        fixed(packw), fixed(utp), fixed(jt),
        pl.BlockSpec((bt, Np), lambda b, t: (b, 0)),        # x0   (batch-tiled)
    ]
    out_shape = (
        jax.ShapeDtypeStruct((Bp, lanes), f32),             # [probs | bg | 0]
        jax.ShapeDtypeStruct((Tp, Bp, Np), f32),            # r_hidden (T, B, N)
        jax.ShapeDtypeStruct((Tp, Bp, Np), act_dtype),      # r_act    (T, B, N)
    )
    out_specs = [
        pl.BlockSpec((bt, lanes), lambda b, t: (b, 0)),
        pl.BlockSpec((tc, bt, Np), lambda b, t: (t, b, 0)),
        pl.BlockSpec((tc, bt, Np), lambda b, t: (t, b, 0)),
    ]
    scratch_shapes = [
        pltpu.VMEM((bt, Np), f32),       # x
        pltpu.VMEM((bt, Np), f32),       # tanh(x)
        pltpu.VMEM((bt, Np), f32),       # alpha * gain
        pltpu.VMEM((bt, lanes), f32),    # [probs | bg | 0] slab
    ]

    # Derived VMEM budget: double-buffered in/out blocks + scratch + headroom.
    def nbytes(shape, dtype):
        return math.prod(shape) * jnp.dtype(dtype).itemsize

    blk_bytes = (
        nbytes((bt, d_in), f32) + nbytes(w1b.shape, bf16)
        + nbytes(w2b.shape, bf16) + nbytes(w3b.shape, bf16)
        + nbytes(packw.shape, f32) + nbytes(utp.shape, f32)
        + nbytes(jt.shape, bf16) + nbytes((bt, Np), f32)
        + nbytes((bt, lanes), f32) + nbytes((tc, bt, Np), f32)
        + nbytes((tc, bt, Np), act_dtype)
    )
    scratch_bytes = 3 * nbytes((bt, Np), f32) + nbytes((bt, lanes), f32)
    vmem_limit = min(2 * (2 * blk_bytes + scratch_bytes) + (8 << 20), 64 << 20)

    small, rh, ra = pl.pallas_call(
        kernel,
        out_shape=out_shape,
        grid_spec=pltpu.PrefetchScalarGridSpec(
            num_scalar_prefetch=0,
            grid=(n_bt, n_tc),
            in_specs=in_specs,
            out_specs=out_specs,
            scratch_shapes=scratch_shapes),
        compiler_params=pltpu.CompilerParams(
            dimension_semantics=("parallel", "arbitrary"),
            vmem_limit_bytes=vmem_limit),
    )(*inputs)

    rh = rh[:n_steps, :B, :N]
    ra = ra[:n_steps, :B, :N]
    if batch_major:  # torch-style [B, T, N]; costs an extra HBM round-trip
        rh = jnp.transpose(rh, (1, 0, 2))
        ra = jnp.transpose(ra, (1, 0, 2))

    return {
        "r_hidden": rh,
        "r_act": ra,
        "bg_act": small[:B, C:C + nbg],
        "cluster_probs": small[:B, :C],
    }


def rnn_gmm_reference(xc, w1, w2, w3, means, J, U, x0, *, dt, tau, n_steps):
    """Pure-JAX f32 reference for tolerance checking."""
    h1 = jnp.maximum(xc @ w1, 0.0)
    h2 = jnp.maximum(h1 @ w2, 0.0)
    probs = jax.nn.softmax(h2 @ w3, axis=-1)
    bg = probs @ means
    gain = 1.0 + bg @ U.T
    alpha = dt / tau
    x = x0
    rh, ra = [], []
    for _ in range(n_steps):
        r = jnp.tanh(x)
        x = x + alpha * (-x + (r @ J.T) * gain)
        rh.append(x)
        ra.append(jnp.tanh(x))
    return probs, bg, jnp.stack(rh), jnp.stack(ra)


if __name__ == "__main__":
    # Small shapes consistent with RNNGMM's constructor (scaled down); chosen
    # to exercise batch / neuron / time padding and both grid axes.
    B = 12           # batch
    D_IN = 8         # bg_input_size
    H1, H2 = 32, 16  # bg_layer_sizes
    C = 8            # n_classes
    NBG = 16         # nbg (GMM latent dim / thalamic gain dim)
    N = 120          # nneurons (padded to 128 lanes inside the wrapper)
    T = 7            # rollout length (padded to a whole T-chunk)
    G0 = 1.2
    DT, TAU = 0.05, 0.15

    key = jax.random.PRNGKey(0)
    ks = jax.random.split(key, 8)

    xc = jax.random.normal(ks[0], (B, D_IN), jnp.float32)
    std = 1.0 / C                                  # MLP init std = 1/n_classes
    w1 = std * jax.random.normal(ks[1], (D_IN, H1), jnp.float32)
    w2 = std * jax.random.normal(ks[2], (H1, H2), jnp.float32)
    w3 = std * jax.random.normal(ks[3], (H2, C), jnp.float32)
    means = jax.random.normal(ks[4], (C, NBG), jnp.float32)
    J = (G0 / jnp.sqrt(N)) * jax.random.normal(ks[5], (N, N), jnp.float32)
    U = (1.0 / jnp.sqrt(NBG)) * jax.random.normal(ks[6], (N, NBG), jnp.float32)
    x0 = 0.1 * jax.random.normal(ks[7], (B, N), jnp.float32)

    out = rnn_gmm_forward(xc, w1, w2, w3, means, J, U, x0,
                          dt=DT, tau=TAU, n_steps=T,
                          batch_tile=8, t_chunk=4)
    out = jax.block_until_ready(out)

    assert out["cluster_probs"].shape == (B, C)
    assert out["bg_act"].shape == (B, NBG)
    assert out["r_hidden"].shape == (T, B, N)      # time-major by default
    assert out["r_act"].shape == (T, B, N)
    assert all(bool(jnp.all(jnp.isfinite(v.astype(jnp.float32))))
               for v in out.values())

    # Loose sanity tolerance vs f32 reference (bf16 MXU operands for the MLP
    # and recurrence plus bf16 r_act output introduce small numeric drift).
    p_ref, bg_ref, rh_ref, ra_ref = rnn_gmm_reference(
        xc, w1, w2, w3, means, J, U, x0, dt=DT, tau=TAU, n_steps=T)
    assert float(jnp.max(jnp.abs(out["cluster_probs"] - p_ref))) < 5e-2
    assert float(jnp.max(jnp.abs(out["bg_act"] - bg_ref))) < 5e-2
    assert float(jnp.max(jnp.abs(out["r_hidden"] - rh_ref))) < 5e-2
    assert float(jnp.max(jnp.abs(out["r_act"].astype(jnp.float32) - ra_ref))) < 5e-2

    print("KERNEL_OK")
</pallas_src>

<mosaic_0001>
module attributes {stable_mosaic.version = 11 : i64} {
  func.func @rnn_gmm_kernel(%arg0: i32, %arg1: i32, %arg2: memref<8x8xf32, #tpu.memory_space<vmem>>, %arg3: memref<8x32xbf16, #tpu.memory_space<vmem>>, %arg4: memref<32x16xbf16, #tpu.memory_space<vmem>>, %arg5: memref<16x8xbf16, #tpu.memory_space<vmem>>, %arg6: memref<8x128xf32, #tpu.memory_space<vmem>>, %arg7: memref<128x128xf32, #tpu.memory_space<vmem>>, %arg8: memref<128x128xbf16, #tpu.memory_space<vmem>>, %arg9: memref<8x128xf32, #tpu.memory_space<vmem>>, %arg10: memref<8x128xf32, #tpu.memory_space<vmem>>, %arg11: memref<4x8x128xf32, #tpu.memory_space<vmem>>, %arg12: memref<4x8x128xbf16, #tpu.memory_space<vmem>>, %arg13: memref<8x128xf32, #tpu.memory_space<vmem>>, %arg14: memref<8x128xf32, #tpu.memory_space<vmem>>, %arg15: memref<8x128xf32, #tpu.memory_space<vmem>>, %arg16: memref<8x128xf32, #tpu.memory_space<vmem>>) attributes {dimension_semantics = [#tpu.dimension_semantics<parallel>, #tpu.dimension_semantics<arbitrary>], iteration_bounds = array<i64: 2, 2>, scalar_prefetch = 0 : i64, scratch_operands = 4 : i64, tpu.core_type = #tpu.core_type<tc>, window_params = [{transform_indices = @transform_0, window_bounds = array<i64: 8, 8>}, {pipeline_mode = #tpu.pipeline_mode<synchronous>, transform_indices = @transform_1, window_bounds = array<i64: 8, 32>}, {pipeline_mode = #tpu.pipeline_mode<synchronous>, transform_indices = @transform_2, window_bounds = array<i64: 32, 16>}, {pipeline_mode = #tpu.pipeline_mode<synchronous>, transform_indices = @transform_3, window_bounds = array<i64: 16, 8>}, {pipeline_mode = #tpu.pipeline_mode<synchronous>, transform_indices = @transform_4, window_bounds = array<i64: 8, 128>}, {pipeline_mode = #tpu.pipeline_mode<synchronous>, transform_indices = @transform_5, window_bounds = array<i64: 128, 128>}, {pipeline_mode = #tpu.pipeline_mode<synchronous>, transform_indices = @transform_6, window_bounds = array<i64: 128, 128>}, {transform_indices = @transform_7, window_bounds = array<i64: 8, 128>}, {transform_indices = @transform_8, window_bounds = array<i64: 8, 128>}, {transform_indices = @transform_9, window_bounds = array<i64: 4, 8, 128>}, {transform_indices = @transform_10, window_bounds = array<i64: 4, 8, 128>}]} {
    %c0_i32 = arith.constant 0 : i32
    %0 = arith.cmpi eq, %arg1, %c0_i32 : i32
    %1 = arith.extui %0 : i1 to i32
    %c0_i32_0 = arith.constant 0 : i32
    %2 = arith.cmpi ne, %1, %c0_i32_0 : i32
    scf.if %2 {
      %c0_46 = arith.constant 0 : index
      %c0_47 = arith.constant 0 : index
      %78 = vector.load %arg2[%c0_46, %c0_47] : memref<8x8xf32, #tpu.memory_space<vmem>>, vector<8x8xf32>
      %79 = arith.truncf %78 : vector<8x8xf32> to vector<8x8xbf16>
      %c0_48 = arith.constant 0 : index
      %c0_49 = arith.constant 0 : index
      %80 = vector.load %arg3[%c0_48, %c0_49] : memref<8x32xbf16, #tpu.memory_space<vmem>>, vector<8x32xbf16>
      %cst_50 = arith.constant dense<0.000000e+00> : vector<8x32xf32>
      %81 = tpu.matmul %79, %80, %cst_50 {dimension_numbers = #tpu.dot_dimension_numbers<[1], [0], [0], [1], [0, 0, 1, 1], [], []>} : vector<8x8xbf16>, vector<8x32xbf16>, vector<8x32xf32> -> vector<8x32xf32>
      %cst_51 = arith.constant 0.000000e+00 : f32
      %82 = vector.broadcast %cst_51 : f32 to vector<8x32xf32>
      %83 = arith.maximumf %81, %82 : vector<8x32xf32>
      %84 = arith.truncf %83 : vector<8x32xf32> to vector<8x32xbf16>
      %c0_52 = arith.constant 0 : index
      %c0_53 = arith.constant 0 : index
      %85 = vector.load %arg4[%c0_52, %c0_53] : memref<32x16xbf16, #tpu.memory_space<vmem>>, vector<32x16xbf16>
      %cst_54 = arith.constant dense<0.000000e+00> : vector<8x16xf32>
      %86 = tpu.matmul %84, %85, %cst_54 {dimension_numbers = #tpu.dot_dimension_numbers<[1], [0], [0], [1], [0, 0, 1, 1], [], []>} : vector<8x32xbf16>, vector<32x16xbf16>, vector<8x16xf32> -> vector<8x16xf32>
      %cst_55 = arith.constant 0.000000e+00 : f32
      %87 = vector.broadcast %cst_55 : f32 to vector<8x16xf32>
      %88 = arith.maximumf %86, %87 : vector<8x16xf32>
      %89 = arith.truncf %88 : vector<8x16xf32> to vector<8x16xbf16>
      %c0_56 = arith.constant 0 : index
      %c0_57 = arith.constant 0 : index
      %90 = vector.load %arg5[%c0_56, %c0_57] : memref<16x8xbf16, #tpu.memory_space<vmem>>, vector<16x8xbf16>
      %cst_58 = arith.constant dense<0.000000e+00> : vector<8x8xf32>
      %91 = tpu.matmul %89, %90, %cst_58 {dimension_numbers = #tpu.dot_dimension_numbers<[1], [0], [0], [1], [0, 0, 1, 1], [], []>} : vector<8x16xbf16>, vector<16x8xbf16>, vector<8x8xf32> -> vector<8x8xf32>
      %cst_59 = arith.constant dense<0xFF800000> : vector<8xf32>
      %92 = vector.multi_reduction <maximumf>, %91, %cst_59 [1] : vector<8x8xf32> to vector<8xf32>
      %93 = vector.shape_cast %92 : vector<8xf32> to vector<8x1xf32>
      %94 = vector.broadcast %93 : vector<8x1xf32> to vector<8x8xf32>
      %95 = arith.subf %91, %94 : vector<8x8xf32>
      %96 = math.exp %95 : vector<8x8xf32>
      %cst_60 = arith.constant dense<0.000000e+00> : vector<8xf32>
      %97 = vector.multi_reduction <add>, %96, %cst_60 [1] : vector<8x8xf32> to vector<8xf32>
      %98 = vector.shape_cast %97 : vector<8xf32> to vector<8x1xf32>
      %99 = vector.broadcast %98 : vector<8x1xf32> to vector<8x8xf32>
      %100 = arith.divf %96, %99 : vector<8x8xf32>
      %c0_61 = arith.constant 0 : index
      %c0_62 = arith.constant 0 : index
      %101 = vector.load %arg6[%c0_61, %c0_62] : memref<8x128xf32, #tpu.memory_space<vmem>>, vector<8x128xf32>
      %cst_63 = arith.constant dense<0.000000e+00> : vector<8x128xf32>
      %102 = tpu.matmul %100, %101, %cst_63 {dimension_numbers = #tpu.dot_dimension_numbers<[1], [0], [0], [1], [0, 0, 1, 1], [], []>} : vector<8x8xf32>, vector<8x128xf32>, vector<8x128xf32> -> vector<8x128xf32>
      %c0_64 = arith.constant 0 : index
      %c0_65 = arith.constant 0 : index
      %103 = vector.load %arg16[%c0_64, %c0_65] : memref<8x128xf32, #tpu.memory_space<vmem>>, vector<8x128xf32>
      tpu.vector_store %arg16[%c0_64, %c0_65], %102 {strides = array<i32>} : memref<8x128xf32, #tpu.memory_space<vmem>>, vector<8x128xf32>,
      %c0_66 = arith.constant 0 : index
      %c0_67 = arith.constant 0 : index
      %104 = vector.load %arg7[%c0_66, %c0_67] : memref<128x128xf32, #tpu.memory_space<vmem>>, vector<128x128xf32>
      %cst_68 = arith.constant dense<0.000000e+00> : vector<8x128xf32>
      %105 = tpu.matmul %102, %104, %cst_68 {dimension_numbers = #tpu.dot_dimension_numbers<[1], [0], [0], [1], [0, 0, 1, 1], [], []>} : vector<8x128xf32>, vector<128x128xf32>, vector<8x128xf32> -> vector<8x128xf32>
      %cst_69 = arith.constant 1.000000e+00 : f32
      %106 = vector.broadcast %cst_69 : f32 to vector<8x128xf32>
      %107 = arith.addf %106, %105 : vector<8x128xf32>
      %cst_70 = arith.constant 0.333333343 : f32
      %108 = vector.broadcast %cst_70 : f32 to vector<8x128xf32>
      %109 = arith.mulf %108, %107 : vector<8x128xf32>
      %c0_71 = arith.constant 0 : index
      %c0_72 = arith.constant 0 : index
      %110 = vector.load %arg15[%c0_71, %c0_72] : memref<8x128xf32, #tpu.memory_space<vmem>>, vector<8x128xf32>
      tpu.vector_store %arg15[%c0_71, %c0_72], %109 {strides = array<i32>} : memref<8x128xf32, #tpu.memory_space<vmem>>, vector<8x128xf32>,
      %c0_73 = arith.constant 0 : index
      %c0_74 = arith.constant 0 : index
      %111 = vector.load %arg9[%c0_73, %c0_74] : memref<8x128xf32, #tpu.memory_space<vmem>>, vector<8x128xf32>
      %c0_75 = arith.constant 0 : index
      %c0_76 = arith.constant 0 : index
      %112 = vector.load %arg13[%c0_75, %c0_76] : memref<8x128xf32, #tpu.memory_space<vmem>>, vector<8x128xf32>
      tpu.vector_store %arg13[%c0_75, %c0_76], %111 {strides = array<i32>} : memref<8x128xf32, #tpu.memory_space<vmem>>, vector<8x128xf32>,
      %113 = math.tanh %111 : vector<8x128xf32>
      %c0_77 = arith.constant 0 : index
      %c0_78 = arith.constant 0 : index
      %114 = vector.load %arg14[%c0_77, %c0_78] : memref<8x128xf32, #tpu.memory_space<vmem>>, vector<8x128xf32>
      tpu.vector_store %arg14[%c0_77, %c0_78], %113 {strides = array<i32>} : memref<8x128xf32, #tpu.memory_space<vmem>>, vector<8x128xf32>,
    } else {
    }
    %c0 = arith.constant 0 : index
    %c0_1 = arith.constant 0 : index
    %3 = vector.load %arg16[%c0, %c0_1] : memref<8x128xf32, #tpu.memory_space<vmem>>, vector<8x128xf32>
    %c0_2 = arith.constant 0 : index
    %c0_3 = arith.constant 0 : index
    %4 = vector.load %arg10[%c0_2, %c0_3] : memref<8x128xf32, #tpu.memory_space<vmem>>, vector<8x128xf32>
    tpu.vector_store %arg10[%c0_2, %c0_3], %3 {strides = array<i32>} : memref<8x128xf32, #tpu.memory_space<vmem>>, vector<8x128xf32>,
    %c0_4 = arith.constant 0 : index
    %c0_5 = arith.constant 0 : index
    %5 = vector.load %arg15[%c0_4, %c0_5] : memref<8x128xf32, #tpu.memory_space<vmem>>, vector<8x128xf32>
    %c0_6 = arith.constant 0 : index
    %c0_7 = arith.constant 0 : index
    %6 = vector.load %arg13[%c0_6, %c0_7] : memref<8x128xf32, #tpu.memory_space<vmem>>, vector<8x128xf32>
    %c0_8 = arith.constant 0 : index
    %c0_9 = arith.constant 0 : index
    %7 = vector.load %arg14[%c0_8, %c0_9] : memref<8x128xf32, #tpu.memory_space<vmem>>, vector<8x128xf32>
    %c0_i32_10 = arith.constant 0 : i32
    %8 = arith.truncf %7 : vector<8x128xf32> to vector<8x128xbf16>
    %c0_11 = arith.constant 0 : index
    %c0_12 = arith.constant 0 : index
    %9 = vector.load %arg8[%c0_11, %c0_12] : memref<128x128xbf16, #tpu.memory_space<vmem>>, vector<128x128xbf16>
    %cst = arith.constant dense<0.000000e+00> : vector<8x128xf32>
    %10 = tpu.matmul %8, %9, %cst {dimension_numbers = #tpu.dot_dimension_numbers<[1], [0], [0], [1], [0, 0, 1, 1], [], []>} : vector<8x128xbf16>, vector<128x128xbf16>, vector<8x128xf32> -> vector<8x128xf32>
    %cst_13 = arith.constant 0.666666686 : f32
    %11 = vector.broadcast %cst_13 : f32 to vector<8x128xf32>
    %12 = arith.mulf %11, %6 : vector<8x128xf32>
    %13 = arith.mulf %5, %10 : vector<8x128xf32>
    %14 = arith.addf %12, %13 : vector<8x128xf32>
    %15 = math.tanh %14 : vector<8x128xf32>
    %16 = arith.index_cast %c0_i32_10 : i32 to index
    %c0_14 = arith.constant 0 : index
    %c0_15 = arith.constant 0 : index
    %17 = vector.load %arg11[%16, %c0_14, %c0_15] : memref<4x8x128xf32, #tpu.memory_space<vmem>>, vector<1x8x128xf32>
    %18 = vector.shape_cast %17 : vector<1x8x128xf32> to vector<8x128xf32>
    %19 = vector.shape_cast %14 : vector<8x128xf32> to vector<1x8x128xf32>
    tpu.vector_store %arg11[%16, %c0_14, %c0_15], %19 {strides = array<i32>} : memref<4x8x128xf32, #tpu.memory_space<vmem>>, vector<1x8x128xf32>,
    %20 = arith.truncf %15 : vector<8x128xf32> to vector<8x128xbf16>
    %21 = arith.index_cast %c0_i32_10 : i32 to index
    %c0_16 = arith.constant 0 : index
    %c0_17 = arith.constant 0 : index
    %22 = vector.load %arg12[%21, %c0_16, %c0_17] : memref<4x8x128xbf16, #tpu.memory_space<vmem>>, vector<1x8x128xbf16>
    %23 = vector.shape_cast %22 : vector<1x8x128xbf16> to vector<8x128xbf16>
    %24 = vector.shape_cast %20 : vector<8x128xbf16> to vector<1x8x128xbf16>
    tpu.vector_store %arg12[%21, %c0_16, %c0_17], %24 {strides = array<i32>} : memref<4x8x128xbf16, #tpu.memory_space<vmem>>, vector<1x8x128xbf16>,
    %c1_i32 = arith.constant 1 : i32
    %25 = arith.truncf %15 : vector<8x128xf32> to vector<8x128xbf16>
    %c0_18 = arith.constant 0 : index
    %c0_19 = arith.constant 0 : index
    %26 = vector.load %arg8[%c0_18, %c0_19] : memref<128x128xbf16, #tpu.memory_space<vmem>>, vector<128x128xbf16>
    %cst_20 = arith.constant dense<0.000000e+00> : vector<8x128xf32>
    %27 = tpu.matmul %25, %26, %cst_20 {dimension_numbers = #tpu.dot_dimension_numbers<[1], [0], [0], [1], [0, 0, 1, 1], [], []>} : vector<8x128xbf16>, vector<128x128xbf16>, vector<8x128xf32> -> vector<8x128xf32>
    %cst_21 = arith.constant 0.666666686 : f32
    %28 = vector.broadcast %cst_21 : f32 to vector<8x128xf32>
    %29 = arith.mulf %28, %14 : vector<8x128xf32>
    %30 = arith.mulf %5, %27 : vector<8x128xf32>
    %31 = arith.addf %29, %30 : vector<8x128xf32>
    %32 = math.tanh %31 : vector<8x128xf32>
    %33 = arith.index_cast %c1_i32 : i32 to index
    %c0_22 = arith.constant 0 : index
    %c0_23 = arith.constant 0 : index
    %34 = vector.load %arg11[%33, %c0_22, %c0_23] : memref<4x8x128xf32, #tpu.memory_space<vmem>>, vector<1x8x128xf32>
    %35 = vector.shape_cast %34 : vector<1x8x128xf32> to vector<8x128xf32>
    %36 = vector.shape_cast %31 : vector<8x128xf32> to vector<1x8x128xf32>
    tpu.vector_store %arg11[%33, %c0_22, %c0_23], %36 {strides = array<i32>} : memref<4x8x128xf32, #tpu.memory_space<vmem>>, vector<1x8x128xf32>,
    %37 = arith.truncf %32 : vector<8x128xf32> to vector<8x128xbf16>
    %38 = arith.index_cast %c1_i32 : i32 to index
    %c0_24 = arith.constant 0 : index
    %c0_25 = arith.constant 0 : index
    %39 = vector.load %arg12[%38, %c0_24, %c0_25] : memref<4x8x128xbf16, #tpu.memory_space<vmem>>, vector<1x8x128xbf16>
    %40 = vector.shape_cast %39 : vector<1x8x128xbf16> to vector<8x128xbf16>
    %41 = vector.shape_cast %37 : vector<8x128xbf16> to vector<1x8x128xbf16>
    tpu.vector_store %arg12[%38, %c0_24, %c0_25], %41 {strides = array<i32>} : memref<4x8x128xbf16, #tpu.memory_space<vmem>>, vector<1x8x128xbf16>,
    %c2_i32 = arith.constant 2 : i32
    %42 = arith.truncf %32 : vector<8x128xf32> to vector<8x128xbf16>
    %c0_26 = arith.constant 0 : index
    %c0_27 = arith.constant 0 : index
    %43 = vector.load %arg8[%c0_26, %c0_27] : memref<128x128xbf16, #tpu.memory_space<vmem>>, vector<128x128xbf16>
    %cst_28 = arith.constant dense<0.000000e+00> : vector<8x128xf32>
    %44 = tpu.matmul %42, %43, %cst_28 {dimension_numbers = #tpu.dot_dimension_numbers<[1], [0], [0], [1], [0, 0, 1, 1], [], []>} : vector<8x128xbf16>, vector<128x128xbf16>, vector<8x128xf32> -> vector<8x128xf32>
    %cst_29 = arith.constant 0.666666686 : f32
    %45 = vector.broadcast %cst_29 : f32 to vector<8x128xf32>
    %46 = arith.mulf %45, %31 : vector<8x128xf32>
    %47 = arith.mulf %5, %44 : vector<8x128xf32>
    %48 = arith.addf %46, %47 : vector<8x128xf32>
    %49 = math.tanh %48 : vector<8x128xf32>
    %50 = arith.index_cast %c2_i32 : i32 to index
    %c0_30 = arith.constant 0 : index
    %c0_31 = arith.constant 0 : index
    %51 = vector.load %arg11[%50, %c0_30, %c0_31] : memref<4x8x128xf32, #tpu.memory_space<vmem>>, vector<1x8x128xf32>
    %52 = vector.shape_cast %51 : vector<1x8x128xf32> to vector<8x128xf32>
    %53 = vector.shape_cast %48 : vector<8x128xf32> to vector<1x8x128xf32>
    tpu.vector_store %arg11[%50, %c0_30, %c0_31], %53 {strides = array<i32>} : memref<4x8x128xf32, #tpu.memory_space<vmem>>, vector<1x8x128xf32>,
    %54 = arith.truncf %49 : vector<8x128xf32> to vector<8x128xbf16>
    %55 = arith.index_cast %c2_i32 : i32 to index
    %c0_32 = arith.constant 0 : index
    %c0_33 = arith.constant 0 : index
    %56 = vector.load %arg12[%55, %c0_32, %c0_33] : memref<4x8x128xbf16, #tpu.memory_space<vmem>>, vector<1x8x128xbf16>
    %57 = vector.shape_cast %56 : vector<1x8x128xbf16> to vector<8x128xbf16>
    %58 = vector.shape_cast %54 : vector<8x128xbf16> to vector<1x8x128xbf16>
    tpu.vector_store %arg12[%55, %c0_32, %c0_33], %58 {strides = array<i32>} : memref<4x8x128xbf16, #tpu.memory_space<vmem>>, vector<1x8x128xbf16>,
    %c3_i32 = arith.constant 3 : i32
    %59 = arith.truncf %49 : vector<8x128xf32> to vector<8x128xbf16>
    %c0_34 = arith.constant 0 : index
    %c0_35 = arith.constant 0 : index
    %60 = vector.load %arg8[%c0_34, %c0_35] : memref<128x128xbf16, #tpu.memory_space<vmem>>, vector<128x128xbf16>
    %cst_36 = arith.constant dense<0.000000e+00> : vector<8x128xf32>
    %61 = tpu.matmul %59, %60, %cst_36 {dimension_numbers = #tpu.dot_dimension_numbers<[1], [0], [0], [1], [0, 0, 1, 1], [], []>} : vector<8x128xbf16>, vector<128x128xbf16>, vector<8x128xf32> -> vector<8x128xf32>
    %cst_37 = arith.constant 0.666666686 : f32
    %62 = vector.broadcast %cst_37 : f32 to vector<8x128xf32>
    %63 = arith.mulf %62, %48 : vector<8x128xf32>
    %64 = arith.mulf %5, %61 : vector<8x128xf32>
    %65 = arith.addf %63, %64 : vector<8x128xf32>
    %66 = math.tanh %65 : vector<8x128xf32>
    %67 = arith.index_cast %c3_i32 : i32 to index
    %c0_38 = arith.constant 0 : index
    %c0_39 = arith.constant 0 : index
    %68 = vector.load %arg11[%67, %c0_38, %c0_39] : memref<4x8x128xf32, #tpu.memory_space<vmem>>, vector<1x8x128xf32>
    %69 = vector.shape_cast %68 : vector<1x8x128xf32> to vector<8x128xf32>
    %70 = vector.shape_cast %65 : vector<8x128xf32> to vector<1x8x128xf32>
    tpu.vector_store %arg11[%67, %c0_38, %c0_39], %70 {strides = array<i32>} : memref<4x8x128xf32, #tpu.memory_space<vmem>>, vector<1x8x128xf32>,
    %71 = arith.truncf %66 : vector<8x128xf32> to vector<8x128xbf16>
    %72 = arith.index_cast %c3_i32 : i32 to index
    %c0_40 = arith.constant 0 : index
    %c0_41 = arith.constant 0 : index
    %73 = vector.load %arg12[%72, %c0_40, %c0_41] : memref<4x8x128xbf16, #tpu.memory_space<vmem>>, vector<1x8x128xbf16>
    %74 = vector.shape_cast %73 : vector<1x8x128xbf16> to vector<8x128xbf16>
    %75 = vector.shape_cast %71 : vector<8x128xbf16> to vector<1x8x128xbf16>
    tpu.vector_store %arg12[%72, %c0_40, %c0_41], %75 {strides = array<i32>} : memref<4x8x128xbf16, #tpu.memory_space<vmem>>, vector<1x8x128xbf16>,
    %c4_i32 = arith.constant 4 : i32
    %c0_42 = arith.constant 0 : index
    %c0_43 = arith.constant 0 : index
    %76 = vector.load %arg13[%c0_42, %c0_43] : memref<8x128xf32, #tpu.memory_space<vmem>>, vector<8x128xf32>
    tpu.vector_store %arg13[%c0_42, %c0_43], %65 {strides = array<i32>} : memref<8x128xf32, #tpu.memory_space<vmem>>, vector<8x128xf32>,
    %c0_44 = arith.constant 0 : index
    %c0_45 = arith.constant 0 : index
    %77 = vector.load %arg14[%c0_44, %c0_45] : memref<8x128xf32, #tpu.memory_space<vmem>>, vector<8x128xf32>
    tpu.vector_store %arg14[%c0_44, %c0_45], %66 {strides = array<i32>} : memref<8x128xf32, #tpu.memory_space<vmem>>, vector<8x128xf32>,
    return
  }
  func.func @transform_0(%arg0: i32, %arg1: i32) -> (i32, i32) {
    %c0_i32 = arith.constant 0 : i32
    %c0_i32_0 = arith.constant 0 : i32
    return %arg0, %c0_i32 : i32, i32
  }
  func.func @transform_1(%arg0: i32, %arg1: i32) -> (i32, i32) {
    %c0_i32 = arith.constant 0 : i32
    %c0_i32_0 = arith.constant 0 : i32
    %c0_i32_1 = arith.constant 0 : i32
    return %c0_i32, %c0_i32_0 : i32, i32
  }
  func.func @transform_2(%arg0: i32, %arg1: i32) -> (i32, i32) {
    %c0_i32 = arith.constant 0 : i32
    %c0_i32_0 = arith.constant 0 : i32
    %c0_i32_1 = arith.constant 0 : i32
    return %c0_i32, %c0_i32_0 : i32, i32
  }
  func.func @transform_3(%arg0: i32, %arg1: i32) -> (i32, i32) {
    %c0_i32 = arith.constant 0 : i32
    %c0_i32_0 = arith.constant 0 : i32
    %c0_i32_1 = arith.constant 0 : i32
    return %c0_i32, %c0_i32_0 : i32, i32
  }
  func.func @transform_4(%arg0: i32, %arg1: i32) -> (i32, i32) {
    %c0_i32 = arith.constant 0 : i32
    %c0_i32_0 = arith.constant 0 : i32
    %c0_i32_1 = arith.constant 0 : i32
    return %c0_i32, %c0_i32_0 : i32, i32
  }
  func.func @transform_5(%arg0: i32, %arg1: i32) -> (i32, i32) {
    %c0_i32 = arith.constant 0 : i32
    %c0_i32_0 = arith.constant 0 : i32
    %c0_i32_1 = arith.constant 0 : i32
    return %c0_i32, %c0_i32_0 : i32, i32
  }
  func.func @transform_6(%arg0: i32, %arg1: i32) -> (i32, i32) {
    %c0_i32 = arith.constant 0 : i32
    %c0_i32_0 = arith.constant 0 : i32
    %c0_i32_1 = arith.constant 0 : i32
    return %c0_i32, %c0_i32_0 : i32, i32
  }
  func.func @transform_7(%arg0: i32, %arg1: i32) -> (i32, i32) {
    %c0_i32 = arith.constant 0 : i32
    %c0_i32_0 = arith.constant 0 : i32
    return %arg0, %c0_i32 : i32, i32
  }
  func.func @transform_8(%arg0: i32, %arg1: i32) -> (i32, i32) {
    %c0_i32 = arith.constant 0 : i32
    %c0_i32_0 = arith.constant 0 : i32
    return %arg0, %c0_i32 : i32, i32
  }
  func.func @transform_9(%arg0: i32, %arg1: i32) -> (i32, i32, i32) {
    %c0_i32 = arith.constant 0 : i32
    %c0_i32_0 = arith.constant 0 : i32
    return %arg1, %arg0, %c0_i32 : i32, i32, i32
  }
  func.func @transform_10(%arg0: i32, %arg1: i32) -> (i32, i32, i32) {
    %c0_i32 = arith.constant 0 : i32
    %c0_i32_0 = arith.constant 0 : i32
    return %arg1, %arg0, %c0_i32 : i32, i32, i32
  }
}

</mosaic_0001>

<llo_original>
// kernel: tpu_custom_call.1
$region0: #{tpu_custom_call.1}
  #allocation0 [shape = 'u32[]', space=smem, size = 0x4, offset = 0x4, fixed_abs, tag = 'smem constant byte address 0x4 - core index']
  #allocation1 [shape = 'u32[144,128]{1,0:T(1,128)}', space=vmem, size = 0x12000, scoped, tag = 'internal scratch']
  #allocation2 [shape = 'f32[8,128]{1,0:T(8,128)}', space=vmem, size = 0x1000, scoped, tag = 'scratch operand']
  #allocation3 [shape = 'f32[8,128]{1,0:T(8,128)}', space=vmem, size = 0x1000, scoped, tag = 'scratch operand']
  #allocation4 [shape = 'f32[8,128]{1,0:T(8,128)}', space=vmem, size = 0x1000, scoped, tag = 'scratch operand']
  #allocation5 [shape = 'f32[8,128]{1,0:T(8,128)}', space=vmem, size = 0x1000, scoped, tag = 'scratch operand']
  %s0 = inlined_call_operand.vmem [shape: f32[16,8], index: 0, kind: input, shape index: {}]
  %s1 = inlined_call_operand.hbm [shape: bf16[8,32], index: 1, kind: input, shape index: {}]
  %s2 = inlined_call_operand.vmem [shape: bf16[32,16], index: 2, kind: input, shape index: {}]
  %s3 = inlined_call_operand.vmem [shape: bf16[16,8], index: 3, kind: input, shape index: {}]
  %s4 = inlined_call_operand.hbm [shape: f32[8,128], index: 4, kind: input, shape index: {}]
  %s5 = inlined_call_operand.hbm [shape: f32[128,128], index: 5, kind: input, shape index: {}]
  %s6 = inlined_call_operand.vmem [shape: bf16[128,128], index: 6, kind: input, shape index: {}]
  %s7 = inlined_call_operand.vmem [shape: f32[16,128], index: 7, kind: input, shape index: {}]
  %s8 = inlined_call_operand.hbm [shape: f32[16,128], index: 8, kind: output, shape index: {0}]
  %s9 = inlined_call_operand.hbm [shape: f32[8,16,128], index: 9, kind: output, shape index: {1}]
  %s10 = inlined_call_operand.hbm [shape: bf16[8,16,128], index: 10, kind: output, shape index: {2}]
  %11 = xla_tuple %s8, %s9, %s10
  %s12 = sld [smem:[#allocation0]]
  $region97: #{tpu_custom_call.1} parent=0
    _
  %s14 = ssub.s32 1, %s12
  %s15 = scalar_select 0, %s14, %s12
  $region1: #{tpu_custom_call.1} parent=0
    #allocation6 [shape = 'u8[2048]{0}', space=vmem, size = 0x800, scoped, tag = 'input window, operand 1, single buffered']
    #allocation7 [shape = 's32[2]{0}', space=sflag, size = 0x8, scoped, tag = 'scoped memory for tpu_custom_call.1']
    #allocation8 [shape = 's32[2]{0}', space=sflag, size = 0x8, scoped, tag = 'scoped memory for tpu_custom_call.1']
    #allocation9 [shape = 'u8[4096]{0}', space=vmem, size = 0x1000, scoped, tag = 'input window, operand 4, single buffered']
    #allocation10 [shape = 's32[1]{0}', space=sflag, size = 0x4, scoped, tag = 'scoped memory for tpu_custom_call.1']
    #allocation11 [shape = 'u8[65536]{0}', space=vmem, size = 0x10000, scoped, tag = 'input window, operand 5, single buffered']
    #allocation12 [shape = 'u8[8192]{0}', space=vmem, size = 0x2000, scoped, tag = 'output window, operand 0']
    #allocation13 [shape = 'u8[32768]{0}', space=vmem, size = 0x8000, scoped, tag = 'output window, operand 1']
    #allocation14 [shape = 's32[2]{0}', space=sflag, size = 0x8, scoped, tag = 'scoped memory for tpu_custom_call.1']
    #allocation15 [shape = 'u8[16384]{0}', space=vmem, size = 0x4000, scoped, tag = 'output window, operand 2']
    %16 = vsyncpa [#allocation7], 0
    %17 = vsyncpa [#allocation10], 0
    %18 = vsyncpa [#allocation8], 0
    %s19 = scalar_lea.sflag [#allocation8], 1
    %20 = vsyncpa %s19, 0
    %21 = vsyncpa [#allocation14], 0
    %s22 = scalar_lea.sflag [#allocation14], 1
    %23 = vsyncpa %s22, 0
    loop: start=0, step=1, limit=6
    $region2: #{tpu_custom_call.1} parent=1 // loop_pre_header
      _
    $region3: #{tpu_custom_call.1} parent=1 // loop_header
      %s25 = sphi 0, %s29
      %p26 = scmp.ge.s32.totalorder %s25, 6
      %s32 = sphi 0, %s44
      %s33 = sphi 0, %s40
      %s34 = sphi 0, %s32
      %s35 = sphi 0, %s33
      %s36 = sphi 0, %s34
      %s37 = sphi 0, %s35
      %s47 = sphi 0, %s49
      %s50 = sphi 0, %s47
      %s51 = sphi 0, %s50
      %s67 = sphi 0, %s51
      %s71 = sphi 0, %s71
      %s73 = sphi 0, %s71
      %s74 = sphi 0, %s73
      %s88 = sphi 0, %s74
      %s92 = sphi 0, %s92
      %s94 = sphi 0, %s92
      %s95 = sphi 0, %s94
      %s109 = sphi 0, %s95
      %s113 = sphi 0, %s113
      %s115 = sphi 0, %s113
      %s116 = sphi 0, %s115
      %s130 = sphi 0, %s116
      %s134 = sphi 0, %s134
      %s136 = sphi 0, %s134
      %s137 = sphi 0, %s136
      %s151 = sphi 0, %s137
      %s155 = sphi 0, %s155
      %s157 = sphi 0, %s155
      %s158 = sphi 0, %s157
      %s172 = sphi 0, %s158
      %s176 = sphi 0, %s176
      %s178 = sphi 0, %s176
      %s179 = sphi 0, %s178
      %s193 = sphi 0, %s179
      %s199 = sphi 0, %s201
      %s202 = sphi 0, %s199
      %s203 = sphi 0, %s202
      %s219 = sphi 0, %s203
      %s225 = sphi 0, %s227
      %s228 = sphi 0, %s225
      %s229 = sphi 0, %s228
      %s245 = sphi 0, %s229
      %s253 = sphi 0, %s255
      %s256 = sphi 0, %s253
      %s257 = sphi 0, %s256
      %s273 = sphi 0, %s257
      %s281 = sphi 0, %s283
      %s284 = sphi 0, %s281
      %s285 = sphi 0, %s284
      %s301 = sphi 0, %s285
    $region4: #{tpu_custom_call.1} parent=1 // loop_header_branch
      %28 = sbr.rel (%p26) target = $region8
    $region5: #{tpu_custom_call.1} parent=1 // loop_body
      %s30 = ssub.s32 %s25, 1
      %s31 = ssub.s32 %s25, 2
      %s38 = sadd.s32 1, %s33
      %p39 = scmp.ge.s32.totalorder %s38, 2
      %s40 = scalar_select %p39, 0, %s38
      %s41 = sadd.s32 1, %s32
      %s42 = scalar_select %p39, %s41, %s32
      %p43 = scmp.ge.s32.totalorder %s42, 2
      %s44 = scalar_select %p43, 0, %s42
      %s45 = ssub.s32 %s32, %s44
      %p46 = scmp.eq.s32.totalorder %s45, 0
      %s48 = sadd.s32 %s47, 1
      %s49 = scalar_select %p46, %s47, %s48
      %p52 = pneg %p46
      %p53 = scmp.eq.s32.totalorder %s25, 3
      %p54 = por %p52, %p53
      %p55 = scmp.ne.s32.totalorder %s47, %s50
      %p56 = scmp.eq.s32.totalorder %s25, 0
      %p57 = por %p55, %p56
      %p58 = scmp.ne.s32.totalorder %s47, %s50
      %p59 = scmp.eq.s32.totalorder %s30, 3
      %p60 = por %p58, %p59
      %p61 = scmp.ne.s32.totalorder %s50, %s51
      %p62 = scmp.eq.s32.totalorder %s30, 0
      %p63 = por %p61, %p62
      %p64 = scmp.ne.s32.totalorder %s50, %s51
      %p65 = scmp.eq.s32.totalorder %s31, 3
      %p66 = por %p64, %p65
      %p68 = scmp.ne.s32.totalorder %s51, %s67
      %p69 = scmp.eq.s32.totalorder %s31, 0
      %p70 = por %p68, %p69
      %s72 = sadd.s32 %s71, 1
      %p75 = scmp.eq.s32.totalorder %s25, 3
      %p76 = scmp.ne.s32.totalorder %s71, %s73
      %p77 = scmp.eq.s32.totalorder %s25, 0
      %p78 = por %p76, %p77
      %p79 = scmp.ne.s32.totalorder %s71, %s73
      %p80 = scmp.eq.s32.totalorder %s30, 3
      %p81 = por %p79, %p80
      %p82 = scmp.ne.s32.totalorder %s73, %s74
      %p83 = scmp.eq.s32.totalorder %s30, 0
      %p84 = por %p82, %p83
      %p85 = scmp.ne.s32.totalorder %s73, %s74
      %p86 = scmp.eq.s32.totalorder %s31, 3
      %p87 = por %p85, %p86
      %p89 = scmp.ne.s32.totalorder %s74, %s88
      %p90 = scmp.eq.s32.totalorder %s31, 0
      %p91 = por %p89, %p90
      %s93 = sadd.s32 %s92, 1
      %p96 = scmp.eq.s32.totalorder %s25, 3
      %p97 = scmp.ne.s32.totalorder %s92, %s94
      %p98 = scmp.eq.s32.totalorder %s25, 0
      %p99 = por %p97, %p98
      %p100 = scmp.ne.s32.totalorder %s92, %s94
      %p101 = scmp.eq.s32.totalorder %s30, 3
      %p102 = por %p100, %p101
      %p103 = scmp.ne.s32.totalorder %s94, %s95
      %p104 = scmp.eq.s32.totalorder %s30, 0
      %p105 = por %p103, %p104
      %p106 = scmp.ne.s32.totalorder %s94, %s95
      %p107 = scmp.eq.s32.totalorder %s31, 3
      %p108 = por %p106, %p107
      %p110 = scmp.ne.s32.totalorder %s95, %s109
      %p111 = scmp.eq.s32.totalorder %s31, 0
      %p112 = por %p110, %p111
      %s114 = sadd.s32 %s113, 1
      %p117 = scmp.eq.s32.totalorder %s25, 3
      %p118 = scmp.ne.s32.totalorder %s113, %s115
      %p119 = scmp.eq.s32.totalorder %s25, 0
      %p120 = por %p118, %p119
      %p121 = scmp.ne.s32.totalorder %s113, %s115
      %p122 = scmp.eq.s32.totalorder %s30, 3
      %p123 = por %p121, %p122
      %p124 = scmp.ne.s32.totalorder %s115, %s116
      %p125 = scmp.eq.s32.totalorder %s30, 0
      %p126 = por %p124, %p125
      %p127 = scmp.ne.s32.totalorder %s115, %s116
      %p128 = scmp.eq.s32.totalorder %s31, 3
      %p129 = por %p127, %p128
      %p131 = scmp.ne.s32.totalorder %s116, %s130
      %p132 = scmp.eq.s32.totalorder %s31, 0
      %p133 = por %p131, %p132
      %s135 = sadd.s32 %s134, 1
      %p138 = scmp.eq.s32.totalorder %s25, 3
      %p139 = scmp.ne.s32.totalorder %s134, %s136
      %p140 = scmp.eq.s32.totalorder %s25, 0
      %p141 = por %p139, %p140
      %p142 = scmp.ne.s32.totalorder %s134, %s136
      %p143 = scmp.eq.s32.totalorder %s30, 3
      %p144 = por %p142, %p143
      %p145 = scmp.ne.s32.totalorder %s136, %s137
      %p146 = scmp.eq.s32.totalorder %s30, 0
      %p147 = por %p145, %p146
      %p148 = scmp.ne.s32.totalorder %s136, %s137
      %p149 = scmp.eq.s32.totalorder %s31, 3
      %p150 = por %p148, %p149
      %p152 = scmp.ne.s32.totalorder %s137, %s151
      %p153 = scmp.eq.s32.totalorder %s31, 0
      %p154 = por %p152, %p153
      %s156 = sadd.s32 %s155, 1
      %p159 = scmp.eq.s32.totalorder %s25, 3
      %p160 = scmp.ne.s32.totalorder %s155, %s157
      %p161 = scmp.eq.s32.totalorder %s25, 0
      %p162 = por %p160, %p161
      %p163 = scmp.ne.s32.totalorder %s155, %s157
      %p164 = scmp.eq.s32.totalorder %s30, 3
      %p165 = por %p163, %p164
      %p166 = scmp.ne.s32.totalorder %s157, %s158
      %p167 = scmp.eq.s32.totalorder %s30, 0
      %p168 = por %p166, %p167
      %p169 = scmp.ne.s32.totalorder %s157, %s158
      %p170 = scmp.eq.s32.totalorder %s31, 3
      %p171 = por %p169, %p170
      %p173 = scmp.ne.s32.totalorder %s158, %s172
      %p174 = scmp.eq.s32.totalorder %s31, 0
      %p175 = por %p173, %p174
      %s177 = sadd.s32 %s176, 1
      %p180 = scmp.eq.s32.totalorder %s25, 3
      %p181 = scmp.ne.s32.totalorder %s176, %s178
      %p182 = scmp.eq.s32.totalorder %s25, 0
      %p183 = por %p181, %p182
      %p184 = scmp.ne.s32.totalorder %s176, %s178
      %p185 = scmp.eq.s32.totalorder %s30, 3
      %p186 = por %p184, %p185
      %p187 = scmp.ne.s32.totalorder %s178, %s179
      %p188 = scmp.eq.s32.totalorder %s30, 0
      %p189 = por %p187, %p188
      %p190 = scmp.ne.s32.totalorder %s178, %s179
      %p191 = scmp.eq.s32.totalorder %s31, 3
      %p192 = por %p190, %p191
      %p194 = scmp.ne.s32.totalorder %s179, %s193
      %p195 = scmp.eq.s32.totalorder %s31, 0
      %p196 = por %p194, %p195
      %s197 = ssub.s32 %s32, %s44
      %p198 = scmp.eq.s32.totalorder %s197, 0
      %s200 = sadd.s32 %s199, 1
      %s201 = scalar_select %p198, %s199, %s200
      %p204 = pneg %p198
      %p205 = scmp.eq.s32.totalorder %s25, 3
      %p206 = por %p204, %p205
      %p207 = scmp.ne.s32.totalorder %s199, %s202
      %p208 = scmp.eq.s32.totalorder %s25, 0
      %p209 = por %p207, %p208
      %p210 = scmp.ne.s32.totalorder %s199, %s202
      %p211 = scmp.eq.s32.totalorder %s30, 3
      %p212 = por %p210, %p211
      %p213 = scmp.ne.s32.totalorder %s202, %s203
      %p214 = scmp.eq.s32.totalorder %s30, 0
      %p215 = por %p213, %p214
      %p216 = scmp.ne.s32.totalorder %s202, %s203
      %p217 = scmp.eq.s32.totalorder %s31, 3
      %p218 = por %p216, %p217
      %p220 = scmp.ne.s32.totalorder %s203, %s219
      %p221 = scmp.eq.s32.totalorder %s31, 0
      %p222 = por %p220, %p221
      %s223 = ssub.s32 %s32, %s44
      %p224 = scmp.eq.s32.totalorder %s223, 0
      %s226 = sadd.s32 %s225, 1
      %s227 = scalar_select %p224, %s225, %s226
      %p230 = pneg %p224
      %p231 = scmp.eq.s32.totalorder %s25, 3
      %p232 = por %p230, %p231
      %p233 = scmp.ne.s32.totalorder %s225, %s228
      %p234 = scmp.eq.s32.totalorder %s25, 0
      %p235 = por %p233, %p234
      %p236 = scmp.ne.s32.totalorder %s225, %s228
      %p237 = scmp.eq.s32.totalorder %s30, 3
      %p238 = por %p236, %p237
      %p239 = scmp.ne.s32.totalorder %s228, %s229
      %p240 = scmp.eq.s32.totalorder %s30, 0
      %p241 = por %p239, %p240
      %p242 = scmp.ne.s32.totalorder %s228, %s229
      %p243 = scmp.eq.s32.totalorder %s31, 3
      %p244 = por %p242, %p243
      %p246 = scmp.ne.s32.totalorder %s229, %s245
      %p247 = scmp.eq.s32.totalorder %s31, 0
      %p248 = por %p246, %p247
      %s249 = ssub.s32 %s33, %s40
      %s250 = ssub.s32 %s32, %s44
      %s251 = sor.u32 %s249, %s250
      %p252 = scmp.eq.s32.totalorder %s251, 0
      %s254 = sadd.s32 %s253, 1
      %s255 = scalar_select %p252, %s253, %s254
      %p258 = pneg %p252
      %p259 = scmp.eq.s32.totalorder %s25, 3
      %p260 = por %p258, %p259
      %p261 = scmp.ne.s32.totalorder %s253, %s256
      %p262 = scmp.eq.s32.totalorder %s25, 0
      %p263 = por %p261, %p262
      %p264 = scmp.ne.s32.totalorder %s253, %s256
      %p265 = scmp.eq.s32.totalorder %s30, 3
      %p266 = por %p264, %p265
      %p267 = scmp.ne.s32.totalorder %s256, %s257
      %p268 = scmp.eq.s32.totalorder %s30, 0
      %p269 = por %p267, %p268
      %p270 = scmp.ne.s32.totalorder %s256, %s257
      %p271 = scmp.eq.s32.totalorder %s31, 3
      %p272 = por %p270, %p271
      %p274 = scmp.ne.s32.totalorder %s257, %s273
      %p275 = scmp.eq.s32.totalorder %s31, 0
      %p276 = por %p274, %p275
      %s277 = ssub.s32 %s33, %s40
      %s278 = ssub.s32 %s32, %s44
      %s279 = sor.u32 %s277, %s278
      %p280 = scmp.eq.s32.totalorder %s279, 0
      %s282 = sadd.s32 %s281, 1
      %s283 = scalar_select %p280, %s281, %s282
      %p286 = pneg %p280
      %p287 = scmp.eq.s32.totalorder %s25, 3
      %p288 = por %p286, %p287
      %p289 = scmp.ne.s32.totalorder %s281, %s284
      %p290 = scmp.eq.s32.totalorder %s25, 0
      %p291 = por %p289, %p290
      %p292 = scmp.ne.s32.totalorder %s281, %s284
      %p293 = scmp.eq.s32.totalorder %s30, 3
      %p294 = por %p292, %p293
      %p295 = scmp.ne.s32.totalorder %s284, %s285
      %p296 = scmp.eq.s32.totalorder %s30, 0
      %p297 = por %p295, %p296
      %p298 = scmp.ne.s32.totalorder %s284, %s285
      %p299 = scmp.eq.s32.totalorder %s31, 3
      %p300 = por %p298, %p299
      %p302 = scmp.ne.s32.totalorder %s285, %s301
      %p303 = scmp.eq.s32.totalorder %s31, 0
      %p304 = por %p302, %p303
      %p305 = scmp.le.s32.totalorder 1, %s25
      %p306 = scmp.lt.s32.totalorder %s25, 5
      %p307 = pnand %p305, %p306
      %p308 = pneg %p307
      // Predicated region
      $region9: #{tpu_custom_call.1} parent=5 // pred_check
        _
      $region10: #{tpu_custom_call.1} parent=5 // pred_check_branch
        %310 = sbr.rel (%p307) target = $region12
      $region11: #{tpu_custom_call.1} parent=5 // pred_region
        %s311 = ssub.s32 %s25, 1
        // Predicated region
        $region13: #{tpu_custom_call.1} parent=11 // pred_check
          %p312 = pneg %p84
        $region14: #{tpu_custom_call.1} parent=11 // pred_check_branch
          %314 = sbr.rel (%p312) target = $region16
        $region15: #{tpu_custom_call.1} parent=11 // pred_region
          %s316 = ssub.s32 64, 64
          %317 = vsyncadd [#allocation7], %s316
          %s319 = sshll.u32 [#allocation6], 4
          %s320 = int_to_ptr.vmem [resolvable:$true] %s319
          %322 = dma.hbm_to_vmem [thread:$0]  %s1, 64, %s320, [#allocation7]
        $region16: #{tpu_custom_call.1} parent=11 // pred_fallthru
          _
        // Predicated region
        $region17: #{tpu_custom_call.1} parent=11 // pred_check
          %p323 = pneg %p105
        $region18: #{tpu_custom_call.1} parent=11 // pred_check_branch
          %325 = sbr.rel (%p323) target = $region20
        $region19: #{tpu_custom_call.1} parent=11 // pred_region
          _
        $region20: #{tpu_custom_call.1} parent=11 // pred_fallthru
          _
        // Predicated region
        $region21: #{tpu_custom_call.1} parent=11 // pred_check
          %p326 = pneg %p126
        $region22: #{tpu_custom_call.1} parent=11 // pred_check_branch
          %328 = sbr.rel (%p326) target = $region24
        $region23: #{tpu_custom_call.1} parent=11 // pred_region
          _
        $region24: #{tpu_custom_call.1} parent=11 // pred_fallthru
          _
        // Predicated region
        $region25: #{tpu_custom_call.1} parent=11 // pred_check
          %p329 = pneg %p147
        $region26: #{tpu_custom_call.1} parent=11 // pred_check_branch
          %331 = sbr.rel (%p329) target = $region28
        $region27: #{tpu_custom_call.1} parent=11 // pred_region
          %s333 = ssub.s32 128, 128
          %334 = vsyncadd [#allocation10], %s333
          %s336 = sshll.u32 [#allocation9], 4
          %s337 = int_to_ptr.vmem [resolvable:$true] %s336
          %339 = dma.hbm_to_vmem [thread:$0]  %s4, 128, %s337, [#allocation10]
        $region28: #{tpu_custom_call.1} parent=11 // pred_fallthru
          _
        // Predicated region
        $region29: #{tpu_custom_call.1} parent=11 // pred_check
          %p340 = pneg %p168
        $region30: #{tpu_custom_call.1} parent=11 // pred_check_branch
          %342 = sbr.rel (%p340) target = $region32
        $region31: #{tpu_custom_call.1} parent=11 // pred_region
          %s344 = ssub.s32 2048, 2048
          %345 = vsyncadd [#allocation10], %s344
          %s346 = sshll.u32 [#allocation11], 4
          %s347 = int_to_ptr.vmem [resolvable:$true] %s346
          %352 = dma.hbm_to_vmem [thread:$0]  %s5, 2048, %s347, [#allocation10], 128, 128, 8
        $region32: #{tpu_custom_call.1} parent=11 // pred_fallthru
          _
        // Predicated region
        $region33: #{tpu_custom_call.1} parent=11 // pred_check
          %p353 = pneg %p189
        $region34: #{tpu_custom_call.1} parent=11 // pred_check_branch
          %355 = sbr.rel (%p353) target = $region36
        $region35: #{tpu_custom_call.1} parent=11 // pred_region
          _
        $region36: #{tpu_custom_call.1} parent=11 // pred_fallthru
          _
      $region12: #{tpu_custom_call.1} parent=5 // pred_fallthru
        _
      %p356 = scmp.lt.s32.totalorder %s25, 4
      // Predicated region
      $region37: #{tpu_custom_call.1} parent=5 // pred_check
        %p357 = pneg %p356
      $region38: #{tpu_custom_call.1} parent=5 // pred_check_branch
        %359 = sbr.rel (%p357) target = $region40
      $region39: #{tpu_custom_call.1} parent=5 // pred_region
        // Predicated region
        $region41: #{tpu_custom_call.1} parent=39 // pred_check
          %p360 = pneg %p57
        $region42: #{tpu_custom_call.1} parent=39 // pred_check_branch
          %362 = sbr.rel (%p360) target = $region44
        $region43: #{tpu_custom_call.1} parent=39 // pred_region
          %p363 = scmp.lt.s32.totalorder %s32, 1
          %s364 = scalar_select %p363, %s32, 1
          %s365 = smul.addr %s364, 8
          %s366 = scalar_lea.vmem %s0, %s365
        $region44: #{tpu_custom_call.1} parent=39 // pred_fallthru
          _
        // Predicated region
        $region45: #{tpu_custom_call.1} parent=39 // pred_check
          %p367 = pneg %p209
        $region46: #{tpu_custom_call.1} parent=39 // pred_check_branch
          %369 = sbr.rel (%p367) target = $region48
        $region47: #{tpu_custom_call.1} parent=39 // pred_region
          %p370 = scmp.lt.s32.totalorder %s32, 1
          %s371 = scalar_select %p370, %s32, 1
          %s372 = smul.addr %s371, 8
          %s373 = scalar_lea.vmem %s7, %s372
        $region48: #{tpu_custom_call.1} parent=39 // pred_fallthru
          _
      $region40: #{tpu_custom_call.1} parent=5 // pred_fallthru
        _
      %p374 = scmp.le.s32.totalorder 1, %s25
      %p375 = scmp.lt.s32.totalorder %s25, 5
      %p376 = pnand %p374, %p375
      %p377 = pneg %p376
      // Predicated region
      $region49: #{tpu_custom_call.1} parent=5 // pred_check
        _
      $region50: #{tpu_custom_call.1} parent=5 // pred_check_branch
        %379 = sbr.rel (%p376) target = $region52
      $region51: #{tpu_custom_call.1} parent=5 // pred_region
        %s380 = ssub.s32 %s25, 1
        // Predicated region
        $region53: #{tpu_custom_call.1} parent=51 // pred_check
          %p381 = pneg %p84
        $region54: #{tpu_custom_call.1} parent=51 // pred_check_branch
          %383 = sbr.rel (%p381) target = $region56
        $region55: #{tpu_custom_call.1} parent=51 // pred_region
          %384 = dma.done [#allocation7], 64
        $region56: #{tpu_custom_call.1} parent=51 // pred_fallthru
          _
        // Predicated region
        $region57: #{tpu_custom_call.1} parent=51 // pred_check
          %p385 = pneg %p147
        $region58: #{tpu_custom_call.1} parent=51 // pred_check_branch
          %387 = sbr.rel (%p385) target = $region60
        $region59: #{tpu_custom_call.1} parent=51 // pred_region
          %388 = dma.done [#allocation10], 128
        $region60: #{tpu_custom_call.1} parent=51 // pred_fallthru
          _
        // Predicated region
        $region61: #{tpu_custom_call.1} parent=51 // pred_check
          %p389 = pneg %p168
        $region62: #{tpu_custom_call.1} parent=51 // pred_check_branch
          %391 = sbr.rel (%p389) target = $region64
        $region63: #{tpu_custom_call.1} parent=51 // pred_region
          %392 = dma.done [#allocation10], 2048
        $region64: #{tpu_custom_call.1} parent=51 // pred_fallthru
          _
        %p393 = scmp.lt.s32.totalorder %s34, 1
        %s394 = scalar_select %p393, %s34, 1
        %s395 = smul.addr %s394, 8
        %s396 = scalar_lea.vmem %s0, %s395
        %p397 = pneg %p63
        %p398 = pneg %p60
        %p399 = pneg %p84
        %p400 = pneg %p81
        %p401 = pneg %p105
        %p402 = pneg %p102
        %p403 = pneg %p126
        %p404 = pneg %p123
        %p405 = pneg %p147
        %p406 = pneg %p144
        %p407 = pneg %p168
        %p408 = pneg %p165
        %p409 = pneg %p189
        %p410 = pneg %p186
        %p411 = scmp.lt.s32.totalorder %s34, 1
        %s412 = scalar_select %p411, %s34, 1
        %s413 = smul.addr %s412, 8
        %s414 = scalar_lea.vmem %s7, %s413
        %p415 = pneg %p215
        %p416 = pneg %p212
        %p417 = pneg %p241
        %p418 = pneg %p238
        %s419 = sand.u32 %s228, 1
        %s420 = scalar_lea.sflag [#allocation8], %s419
        %s421 = sand.u32 %s228, 1
        %s422 = smul.addr %s421, 8
        %s423 = scalar_lea.vmem [#allocation12], %s422
        %p424 = pneg %p269
        %p425 = pneg %p266
        %s426 = sand.u32 %s30, 1
        %s427 = scalar_lea.sflag [#allocation14], %s426
        %s428 = sand.u32 %s256, 1
        %s429 = smul.addr %s428, 32
        %s430 = scalar_lea.vmem [#allocation13], %s429
        %p431 = pneg %p297
        %p432 = pneg %p294
        %s433 = sand.u32 %s30, 1
        %s434 = scalar_lea.sflag [#allocation14], %s433
        %s435 = sand.u32 %s284, 1
        %s436 = smul.addr %s435, 16
        %s437 = scalar_lea.vmem [#allocation15], %s436
        %p438 = scmp.lt.s32.totalorder %s34, 1
        %s439 = scalar_select %p438, %s34, 1
        %s440 = smul.addr %s439, 8
        %s441 = scalar_lea.vmem %s0, %s440
        %p442 = scmp.lt.s32.totalorder %s34, 1
        %s443 = scalar_select %p442, %s34, 1
        %s444 = smul.addr %s443, 8
        %s445 = scalar_lea.vmem %s7, %s444
        %s446 = smul.u32 4, %s35
        %s447 = smul.u32 4, %s35
        %p449 = scmp.eq.s32.totalorder %s35, 0
        // Predicated region
        $region65: #{tpu_custom_call.1} parent=51 // pred_check
          %p450 = pneg %p449
        $region66: #{tpu_custom_call.1} parent=51 // pred_check_branch
          %452 = sbr.rel (%p450) target = $region68
        $region67: #{tpu_custom_call.1} parent=51 // pred_region
          %v453 = vld [vmem:[%s441] sm:$0xff]
          %v454 = vpack.c.bf16 %v453, %v453
          %v455 = vld [vmem:[#allocation6] sm:$0xf]
          %vm456 = vcmask 64512
          %v458 = vsel %vm456, %v454, 0
          %vm460 = vcmask 1043456
          %v462 = vsel %vm460, %v455, 0
          %464 = vmatprep.subr.bf16.mxu0 0
          %465 = vmatpush1.bf16.msra.mxu0 %v462
          %466 = vmatprep.subr.bf16.mxu0 0
          %467 = vmatpush1.bf16.msra.mxu0 0
          %468 = vmatprep.subr.bf16.mxu0 0
          %469 = vmatpush1.bf16.msra.mxu0 0
          %470 = vmatprep.subr.bf16.mxu0 0
          %471 = vmatpush1.bf16.msra.mxu0 0
          %472 = vmatprep.subr.bf16.mxu0 0
          %473 = vmatpush1.bf16.msra.mxu0 0
          %474 = vmatprep.subr.bf16.mxu0 0
          %475 = vmatpush1.bf16.msra.mxu0 0
          %476 = vmatprep.subr.bf16.mxu0 0
          %477 = vmatpush1.bf16.msra.mxu0 0
          %478 = vmatprep.subr.bf16.mxu0 0
          %479 = vmatpush1.bf16.msra.mxu0 0
          %480 = vmatprep.subr.bf16.mxu0 0
          %481 = vmatpush1.bf16.msra.mxu0 0
          %482 = vmatprep.subr.bf16.mxu0 0
          %483 = vmatpush1.bf16.msra.mxu0 0
          %484 = vmatprep.subr.bf16.mxu0 0
          %485 = vmatpush1.bf16.msra.mxu0 0
          %486 = vmatprep.subr.bf16.mxu0 0
          %487 = vmatpush1.bf16.msra.mxu0 0
          %488 = vmatprep.subr.bf16.mxu0 0
          %489 = vmatpush1.bf16.msra.mxu0 0
          %490 = vmatprep.subr.bf16.mxu0 0
          %491 = vmatpush1.bf16.msra.mxu0 0
          %492 = vmatprep.subr.bf16.mxu0 0
          %493 = vmatpush1.bf16.msra.mxu0 0
          %494 = vmatprep.subr.bf16.mxu0 0
          %495 = vmatpush1.bf16.msra.mxu0 0
          %496 = vmatprep.mubr.bf16.mxu0 0
          %497 = vmatmul.mubr.bf16.gmra.mrb[0].mxu0 %v458
          %v498 = vpop.f32.mrb[0].mxu0
          %v499 = vadd.f32 0.0, %v498
          %v500 = vpop.f32.mrb[0].mxu0
          %v501 = vpop.f32.mrb[0].mxu0
          %v502 = vpop.f32.mrb[0].mxu0
          %503 = vdwg.mxu0
          %v504 = vmax.f32 %v499, 0.0
          %v505 = vpack.c.bf16 %v504, %v504
          %v506 = vld [vmem:[%s2] sm:$0xf]
          %v507 = vld [vmem:[%s2 + $0x4] sm:$0xf]
          %v508 = vld [vmem:[%s2 + $0x8] sm:$0xf]
          %v509 = vld [vmem:[%s2 + $0xc] sm:$0xf]
          %v514 = vunpack.c.l.b16 %v506
          %v515 = vunpack.c.l.b16 %v507
          %v516 = vunpack.c.l.b16 %v508
          %v517 = vunpack.c.l.b16 %v509
          %v518 = vpack.c.b16 %v515, %v514
          %v519 = vpack.c.b16 %v517, %v516
          %vm522 = vcmask 261120
          %v524 = vsel %vm522, %v505, 0
          %526 = vmatprep.subr.bf16.mxu0 0
          %527 = vmatpush1.bf16.msra.mxu0 %v518
          %528 = vmatprep.subr.bf16.mxu0 0
          %529 = vmatpush1.bf16.msra.mxu0 %v519
          %530 = vmatprep.subr.bf16.mxu0 0
          %531 = vmatpush1.bf16.msra.mxu0 0
          %532 = vmatprep.subr.bf16.mxu0 0
          %533 = vmatpush1.bf16.msra.mxu0 0
          %534 = vmatprep.subr.bf16.mxu0 0
          %535 = vmatpush1.bf16.msra.mxu0 0
          %536 = vmatprep.subr.bf16.mxu0 0
          %537 = vmatpush1.bf16.msra.mxu0 0
          %538 = vmatprep.subr.bf16.mxu0 0
          %539 = vmatpush1.bf16.msra.mxu0 0
          %540 = vmatprep.subr.bf16.mxu0 0
          %541 = vmatpush1.bf16.msra.mxu0 0
          %542 = vmatprep.subr.bf16.mxu0 0
          %543 = vmatpush1.bf16.msra.mxu0 0
          %544 = vmatprep.subr.bf16.mxu0 0
          %545 = vmatpush1.bf16.msra.mxu0 0
          %546 = vmatprep.subr.bf16.mxu0 0
          %547 = vmatpush1.bf16.msra.mxu0 0
          %548 = vmatprep.subr.bf16.mxu0 0
          %549 = vmatpush1.bf16.msra.mxu0 0
          %550 = vmatprep.subr.bf16.mxu0 0
          %551 = vmatpush1.bf16.msra.mxu0 0
          %552 = vmatprep.subr.bf16.mxu0 0
          %553 = vmatpush1.bf16.msra.mxu0 0
          %554 = vmatprep.subr.bf16.mxu0 0
          %555 = vmatpush1.bf16.msra.mxu0 0
          %556 = vmatprep.subr.bf16.mxu0 0
          %557 = vmatpush1.bf16.msra.mxu0 0
          %558 = vmatprep.mubr.bf16.mxu0 0
          %559 = vmatmul.mubr.bf16.gmra.mrb[0].mxu0 %v524
          %v560 = vpop.f32.mrb[0].mxu0
          %v561 = vadd.f32 0.0, %v560
          %v562 = vpop.f32.mrb[0].mxu0
          %v563 = vpop.f32.mrb[0].mxu0
          %v564 = vpop.f32.mrb[0].mxu0
          %565 = vdwg.mxu0
          %v566 = vmax.f32 %v561, 0.0
          %v567 = vpack.c.bf16 %v566, %v566
          %v568 = vld [vmem:[%s3] sm:$0xf]
          %v569 = vld [vmem:[%s3 + $0x4] sm:$0xf]
          %v572 = vunpack.c.l.b16 %v568
          %v573 = vunpack.c.l.b16 %v569
          %v574 = vpack.c.b16 %v573, %v572
          %vm576 = vcmask 130048
          %v578 = vsel %vm576, %v567, 0
          %580 = vmatprep.subr.bf16.mxu0 0
          %581 = vmatpush1.bf16.msra.mxu0 %v574
          %582 = vmatprep.subr.bf16.mxu0 0
          %583 = vmatpush1.bf16.msra.mxu0 0
          %584 = vmatprep.subr.bf16.mxu0 0
          %585 = vmatpush1.bf16.msra.mxu0 0
          %586 = vmatprep.subr.bf16.mxu0 0
          %587 = vmatpush1.bf16.msra.mxu0 0
          %588 = vmatprep.subr.bf16.mxu0 0
          %589 = vmatpush1.bf16.msra.mxu0 0
          %590 = vmatprep.subr.bf16.mxu0 0
          %591 = vmatpush1.bf16.msra.mxu0 0
          %592 = vmatprep.subr.bf16.mxu0 0
          %593 = vmatpush1.bf16.msra.mxu0 0
          %594 = vmatprep.subr.bf16.mxu0 0
          %595 = vmatpush1.bf16.msra.mxu0 0
          %596 = vmatprep.subr.bf16.mxu0 0
          %597 = vmatpush1.bf16.msra.mxu0 0
          %598 = vmatprep.subr.bf16.mxu0 0
          %599 = vmatpush1.bf16.msra.mxu0 0
          %600 = vmatprep.subr.bf16.mxu0 0
          %601 = vmatpush1.bf16.msra.mxu0 0
          %602 = vmatprep.subr.bf16.mxu0 0
          %603 = vmatpush1.bf16.msra.mxu0 0
          %604 = vmatprep.subr.bf16.mxu0 0
          %605 = vmatpush1.bf16.msra.mxu0 0
          %606 = vmatprep.subr.bf16.mxu0 0
          %607 = vmatpush1.bf16.msra.mxu0 0
          %608 = vmatprep.subr.bf16.mxu0 0
          %609 = vmatpush1.bf16.msra.mxu0 0
          %610 = vmatprep.subr.bf16.mxu0 0
          %611 = vmatpush1.bf16.msra.mxu0 0
          %612 = vmatprep.mubr.bf16.mxu0 0
          %613 = vmatmul.mubr.bf16.gmra.mrb[0].mxu0 %v578
          %v614 = vpop.f32.mrb[0].mxu0
          %v615 = vadd.f32 0.0, %v614
          %v616 = vpop.f32.mrb[0].mxu0
          %v617 = vpop.f32.mrb[0].mxu0
          %v618 = vpop.f32.mrb[0].mxu0
          %619 = vdwg.mxu0
          %v620 = vsel %vm456, %v615, -inf
          %621 = vmax.xlane.f32.xlu0 %v620
          %v622 = vpop.xlane.xlu0 %621
          %v623 = vsub.f32 %v615, %v622
          %v624 = vmul.f32 %v623, 1.442695
          %v625 = vpow.pop %v624
          %v626 = vsel %vm456, %v625, 0.0
          %627 = vadd.xlane.f32.xlu0 %v626
          %v628 = vpop.xlane.xlu0 %627
          %v629 = vrcp.pop %v628
          %v630 = vmul.f32 %v625, %v629
          %v631 = vld [vmem:[#allocation9] sm:$0xff]
          %v633 = vsel %vm456, %v630, 0
          %635 = vmatprep.subr.mxu0 0.0
          %636 = vmatpush1.msra.mxu0 %v631
          %637 = vmatprep.subr.mxu0 0.0
          %638 = vmatpush1.msra.mxu0 0.0
          %639 = vmatprep.subr.mxu0 0.0
          %640 = vmatpush1.msra.mxu0 0.0
          %641 = vmatprep.subr.mxu0 0.0
          %642 = vmatpush1.msra.mxu0 0.0
          %643 = vmatprep.subr.mxu0 0.0
          %644 = vmatpush1.msra.mxu0 0.0
          %645 = vmatprep.subr.mxu0 0.0
          %646 = vmatpush1.msra.mxu0 0.0
          %647 = vmatprep.subr.mxu0 0.0
          %648 = vmatpush1.msra.mxu0 0.0
          %649 = vmatprep.subr.mxu0 0.0
          %650 = vmatpush1.msra.mxu0 0.0
          %651 = vmatprep.subr.mxu0 0.0
          %652 = vmatpush1.msra.mxu0 0.0
          %653 = vmatprep.subr.mxu0 0.0
          %654 = vmatpush1.msra.mxu0 0.0
          %655 = vmatprep.subr.mxu0 0.0
          %656 = vmatpush1.msra.mxu0 0.0
          %657 = vmatprep.subr.mxu0 0.0
          %658 = vmatpush1.msra.mxu0 0.0
          %659 = vmatprep.subr.mxu0 0.0
          %660 = vmatpush1.msra.mxu0 0.0
          %661 = vmatprep.subr.mxu0 0.0
          %662 = vmatpush1.msra.mxu0 0.0
          %663 = vmatprep.subr.mxu0 0.0
          %664 = vmatpush1.msra.mxu0 0.0
          %665 = vmatprep.subr.mxu0 0.0
          %666 = vmatpush1.msra.mxu0 0.0
          %667 = vmatprep.subr.mxu0 0.0
          %668 = vmatpush1.msra.mxu0 0.0
          %669 = vmatprep.subr.mxu0 0.0
          %670 = vmatpush1.msra.mxu0 0.0
          %671 = vmatprep.subr.mxu0 0.0
          %672 = vmatpush1.msra.mxu0 0.0
          %673 = vmatprep.subr.mxu0 0.0
          %674 = vmatpush1.msra.mxu0 0.0
          %675 = vmatprep.subr.mxu0 0.0
          %676 = vmatpush1.msra.mxu0 0.0
          %677 = vmatprep.subr.mxu0 0.0
          %678 = vmatpush1.msra.mxu0 0.0
          %679 = vmatprep.subr.mxu0 0.0
          %680 = vmatpush1.msra.mxu0 0.0
          %681 = vmatprep.subr.mxu0 0.0
          %682 = vmatpush1.msra.mxu0 0.0
          %683 = vmatprep.subr.mxu0 0.0
          %684 = vmatpush1.msra.mxu0 0.0
          %685 = vmatprep.subr.mxu0 0.0
          %686 = vmatpush1.msra.mxu0 0.0
          %687 = vmatprep.subr.mxu0 0.0
          %688 = vmatpush1.msra.mxu0 0.0
          %689 = vmatprep.subr.mxu0 0.0
          %690 = vmatpush1.msra.mxu0 0.0
          %691 = vmatprep.subr.mxu0 0.0
          %692 = vmatpush1.msra.mxu0 0.0
          %693 = vmatprep.subr.mxu0 0.0
          %694 = vmatpush1.msra.mxu0 0.0
          %695 = vmatprep.subr.mxu0 0.0
          %696 = vmatpush1.msra.mxu0 0.0
          %697 = vmatprep.subr.mxu0 0.0
          %698 = vmatpush1.msra.mxu0 0.0
          %699 = vmatprep.mubr.f32.mxu0 0.0
          %700 = vmatmul.mubr.f32.gmra.mrb[0].mxu0 %v633
          %v701 = vpop.f32.mrb[0].mxu0
          %v702 = vadd.f32 0.0, %v701
          %v703 = vpop.f32.mrb[0].mxu0
          %704 = vdwg.mxu0
          %705 = vst [vmem:[#allocation5] sm:$0xff] %v702
          %v706 = vld [vmem:[#allocation11] sm:$0xff]
          %v707 = vld [vmem:[#allocation11 + $0x8] sm:$0xff]
          %v708 = vld [vmem:[#allocation11 + $0x10] sm:$0xff]
          %v709 = vld [vmem:[#allocation11 + $0x18] sm:$0xff]
          %v710 = vld [vmem:[#allocation11 + $0x20] sm:$0xff]
          %v711 = vld [vmem:[#allocation11 + $0x28] sm:$0xff]
          %v712 = vld [vmem:[#allocation11 + $0x30] sm:$0xff]
          %v713 = vld [vmem:[#allocation11 + $0x38] sm:$0xff]
          %v714 = vld [vmem:[#allocation11 + $0x40] sm:$0xff]
          %v715 = vld [vmem:[#allocation11 + $0x48] sm:$0xff]
          %v716 = vld [vmem:[#allocation11 + $0x50] sm:$0xff]
          %v717 = vld [vmem:[#allocation11 + $0x58] sm:$0xff]
          %v718 = vld [vmem:[#allocation11 + $0x60] sm:$0xff]
          %v719 = vld [vmem:[#allocation11 + $0x68] sm:$0xff]
          %v720 = vld [vmem:[#allocation11 + $0x70] sm:$0xff]
          %v721 = vld [vmem:[#allocation11 + $0x78] sm:$0xff]
          %722 = vmatprep.subr.mxu0 0.0
          %723 = vmatpush1.msra.mxu0 %v706
          %724 = vmatprep.subr.mxu0 0.0
          %725 = vmatpush1.msra.mxu0 %v707
          %726 = vmatprep.subr.mxu0 0.0
          %727 = vmatpush1.msra.mxu0 %v708
          %728 = vmatprep.subr.mxu0 0.0
          %729 = vmatpush1.msra.mxu0 %v709
          %730 = vmatprep.subr.mxu0 0.0
          %731 = vmatpush1.msra.mxu0 %v710
          %732 = vmatprep.subr.mxu0 0.0
          %733 = vmatpush1.msra.mxu0 %v711
          %734 = vmatprep.subr.mxu0 0.0
          %735 = vmatpush1.msra.mxu0 %v712
          %736 = vmatprep.subr.mxu0 0.0
          %737 = vmatpush1.msra.mxu0 %v713
          %738 = vmatprep.subr.mxu0 0.0
          %739 = vmatpush1.msra.mxu0 %v714
          %740 = vmatprep.subr.mxu0 0.0
          %741 = vmatpush1.msra.mxu0 %v715
          %742 = vmatprep.subr.mxu0 0.0
          %743 = vmatpush1.msra.mxu0 %v716
          %744 = vmatprep.subr.mxu0 0.0
          %745 = vmatpush1.msra.mxu0 %v717
          %746 = vmatprep.subr.mxu0 0.0
          %747 = vmatpush1.msra.mxu0 %v718
          %748 = vmatprep.subr.mxu0 0.0
          %749 = vmatpush1.msra.mxu0 %v719
          %750 = vmatprep.subr.mxu0 0.0
          %751 = vmatpush1.msra.mxu0 %v720
          %752 = vmatprep.subr.mxu0 0.0
          %753 = vmatpush1.msra.mxu0 %v721
          %754 = vmatprep.subr.mxu0 0.0
          %755 = vmatpush1.msra.mxu0 0.0
          %756 = vmatprep.subr.mxu0 0.0
          %757 = vmatpush1.msra.mxu0 0.0
          %758 = vmatprep.subr.mxu0 0.0
          %759 = vmatpush1.msra.mxu0 0.0
          %760 = vmatprep.subr.mxu0 0.0
          %761 = vmatpush1.msra.mxu0 0.0
          %762 = vmatprep.subr.mxu0 0.0
          %763 = vmatpush1.msra.mxu0 0.0
          %764 = vmatprep.subr.mxu0 0.0
          %765 = vmatpush1.msra.mxu0 0.0
          %766 = vmatprep.subr.mxu0 0.0
          %767 = vmatpush1.msra.mxu0 0.0
          %768 = vmatprep.subr.mxu0 0.0
          %769 = vmatpush1.msra.mxu0 0.0
          %770 = vmatprep.subr.mxu0 0.0
          %771 = vmatpush1.msra.mxu0 0.0
          %772 = vmatprep.subr.mxu0 0.0
          %773 = vmatpush1.msra.mxu0 0.0
          %774 = vmatprep.subr.mxu0 0.0
          %775 = vmatpush1.msra.mxu0 0.0
          %776 = vmatprep.subr.mxu0 0.0
          %777 = vmatpush1.msra.mxu0 0.0
          %778 = vmatprep.subr.mxu0 0.0
          %779 = vmatpush1.msra.mxu0 0.0
          %780 = vmatprep.subr.mxu0 0.0
          %781 = vmatpush1.msra.mxu0 0.0
          %782 = vmatprep.subr.mxu0 0.0
          %783 = vmatpush1.msra.mxu0 0.0
          %784 = vmatprep.subr.mxu0 0.0
          %785 = vmatpush1.msra.mxu0 0.0
          %786 = vmatprep.mubr.f32.mxu0 0.0
          %787 = vmatmul.mubr.f32.gmra.mrb[0].mxu0 %v702
          %v788 = vpop.f32.mrb[0].mxu0
          %v789 = vadd.f32 1.0, %v788
          %v790 = vpop.f32.mrb[0].mxu0
          %791 = vdwg.mxu0
          %v792 = vmul.f32 %v789, 0.33333334
          %793 = vst [vmem:[#allocation4] sm:$0xff] %v792
          %v794 = vld [vmem:[%s445] sm:$0xff]
          %795 = vst [vmem:[#allocation2] sm:$0xff] %v794
          %v796 = vtanh.pop %v794
          %797 = vst [vmem:[#allocation3] sm:$0xff] %v796
        $region68: #{tpu_custom_call.1} parent=51 // pred_fallthru
          _
        %v798 = vld [vmem:[#allocation5] sm:$0xff]
        %799 = vst [vmem:[%s423] sm:$0xff] %v798
        %v800 = vld [vmem:[#allocation4] sm:$0xff]
        %v801 = vld [vmem:[#allocation2] sm:$0xff]
        %v802 = vld [vmem:[#allocation3] sm:$0xff]
        %v803 = vpack.c.bf16 %v802, %v802
        %v804 = vld [vmem:[%s6] sm:$0xf]
        %v805 = vld [vmem:[%s6 + $0x4] sm:$0xf]
        %v806 = vld [vmem:[%s6 + $0x8] sm:$0xf]
        %v807 = vld [vmem:[%s6 + $0xc] sm:$0xf]
        %v808 = vld [vmem:[%s6 + $0x10] sm:$0xf]
        %v809 = vld [vmem:[%s6 + $0x14] sm:$0xf]
        %v810 = vld [vmem:[%s6 + $0x18] sm:$0xf]
        %v811 = vld [vmem:[%s6 + $0x1c] sm:$0xf]
        %v812 = vld [vmem:[%s6 + $0x20] sm:$0xf]
        %v813 = vld [vmem:[%s6 + $0x24] sm:$0xf]
        %v814 = vld [vmem:[%s6 + $0x28] sm:$0xf]
        %v815 = vld [vmem:[%s6 + $0x2c] sm:$0xf]
        %v816 = vld [vmem:[%s6 + $0x30] sm:$0xf]
        %v817 = vld [vmem:[%s6 + $0x34] sm:$0xf]
        %v818 = vld [vmem:[%s6 + $0x38] sm:$0xf]
        %v819 = vld [vmem:[%s6 + $0x3c] sm:$0xf]
        %v836 = vunpack.c.l.b16 %v804
        %v837 = vunpack.c.l.b16 %v805
        %v838 = vunpack.c.l.b16 %v806
        %v839 = vunpack.c.l.b16 %v807
        %v840 = vunpack.c.l.b16 %v808
        %v841 = vunpack.c.l.b16 %v809
        %v842 = vunpack.c.l.b16 %v810
        %v843 = vunpack.c.l.b16 %v811
        %v844 = vunpack.c.l.b16 %v812
        %v845 = vunpack.c.l.b16 %v813
        %v846 = vunpack.c.l.b16 %v814
        %v847 = vunpack.c.l.b16 %v815
        %v848 = vunpack.c.l.b16 %v816
        %v849 = vunpack.c.l.b16 %v817
        %v850 = vunpack.c.l.b16 %v818
        %v851 = vunpack.c.l.b16 %v819
        %v852 = vpack.c.b16 %v837, %v836
        %v853 = vpack.c.b16 %v839, %v838
        %v854 = vpack.c.b16 %v841, %v840
        %v855 = vpack.c.b16 %v843, %v842
        %v856 = vpack.c.b16 %v845, %v844
        %v857 = vpack.c.b16 %v847, %v846
        %v858 = vpack.c.b16 %v849, %v848
        %v859 = vpack.c.b16 %v851, %v850
        %868 = vmatprep.subr.bf16.mxu0 0
        %869 = vmatpush1.bf16.msra.mxu0 %v852
        %870 = vmatprep.subr.bf16.mxu0 0
        %871 = vmatpush1.bf16.msra.mxu0 %v853
        %872 = vmatprep.subr.bf16.mxu0 0
        %873 = vmatpush1.bf16.msra.mxu0 %v854
        %874 = vmatprep.subr.bf16.mxu0 0
        %875 = vmatpush1.bf16.msra.mxu0 %v855
        %876 = vmatprep.subr.bf16.mxu0 0
        %877 = vmatpush1.bf16.msra.mxu0 %v856
        %878 = vmatprep.subr.bf16.mxu0 0
        %879 = vmatpush1.bf16.msra.mxu0 %v857
        %880 = vmatprep.subr.bf16.mxu0 0
        %881 = vmatpush1.bf16.msra.mxu0 %v858
        %882 = vmatprep.subr.bf16.mxu0 0
        %883 = vmatpush1.bf16.msra.mxu0 %v859
        %884 = vmatprep.subr.bf16.mxu0 0
        %885 = vmatpush1.bf16.msra.mxu0 0
        %886 = vmatprep.subr.bf16.mxu0 0
        %887 = vmatpush1.bf16.msra.mxu0 0
        %888 = vmatprep.subr.bf16.mxu0 0
        %889 = vmatpush1.bf16.msra.mxu0 0
        %890 = vmatprep.subr.bf16.mxu0 0
        %891 = vmatpush1.bf16.msra.mxu0 0
        %892 = vmatprep.subr.bf16.mxu0 0
        %893 = vmatpush1.bf16.msra.mxu0 0
        %894 = vmatprep.subr.bf16.mxu0 0
        %895 = vmatpush1.bf16.msra.mxu0 0
        %896 = vmatprep.subr.bf16.mxu0 0
        %897 = vmatpush1.bf16.msra.mxu0 0
        %898 = vmatprep.subr.bf16.mxu0 0
        %899 = vmatpush1.bf16.msra.mxu0 0
        %900 = vmatprep.mubr.bf16.mxu0 0
        %901 = vmatmul.mubr.bf16.gmra.mrb[0].mxu0 %v803
        %v902 = vpop.f32.mrb[0].mxu0
        %v903 = vadd.f32 0.0, %v902
        %v904 = vpop.f32.mrb[0].mxu0
        %v905 = vpop.f32.mrb[0].mxu0
        %v906 = vpop.f32.mrb[0].mxu0
        %907 = vdwg.mxu0
        %v908 = vmul.f32 %v801, 0.6666667
        %v909 = vmul.f32 %v800, %v903
        %v910 = vadd.f32 %v908, %v909
        %v911 = vtanh.pop %v910
        %912 = vst [vmem:[%s430] sm:$0xff] %v910
        %v913 = vpack.c.bf16 %v911, %v911
        %914 = vst [vmem:[%s437] sm:$0xf] %v913
        %v915 = vld [vmem:[%s6] sm:$0xf]
        %v916 = vld [vmem:[%s6 + $0x4] sm:$0xf]
        %v917 = vld [vmem:[%s6 + $0x8] sm:$0xf]
        %v918 = vld [vmem:[%s6 + $0xc] sm:$0xf]
        %v919 = vld [vmem:[%s6 + $0x10] sm:$0xf]
        %v920 = vld [vmem:[%s6 + $0x14] sm:$0xf]
        %v921 = vld [vmem:[%s6 + $0x18] sm:$0xf]
        %v922 = vld [vmem:[%s6 + $0x1c] sm:$0xf]
        %v923 = vld [vmem:[%s6 + $0x20] sm:$0xf]
        %v924 = vld [vmem:[%s6 + $0x24] sm:$0xf]
        %v925 = vld [vmem:[%s6 + $0x28] sm:$0xf]
        %v926 = vld [vmem:[%s6 + $0x2c] sm:$0xf]
        %v927 = vld [vmem:[%s6 + $0x30] sm:$0xf]
        %v928 = vld [vmem:[%s6 + $0x34] sm:$0xf]
        %v929 = vld [vmem:[%s6 + $0x38] sm:$0xf]
        %v930 = vld [vmem:[%s6 + $0x3c] sm:$0xf]
        %v947 = vunpack.c.l.b16 %v915
        %v948 = vunpack.c.l.b16 %v916
        %v949 = vunpack.c.l.b16 %v917
        %v950 = vunpack.c.l.b16 %v918
        %v951 = vunpack.c.l.b16 %v919
        %v952 = vunpack.c.l.b16 %v920
        %v953 = vunpack.c.l.b16 %v921
        %v954 = vunpack.c.l.b16 %v922
        %v955 = vunpack.c.l.b16 %v923
        %v956 = vunpack.c.l.b16 %v924
        %v957 = vunpack.c.l.b16 %v925
        %v958 = vunpack.c.l.b16 %v926
        %v959 = vunpack.c.l.b16 %v927
        %v960 = vunpack.c.l.b16 %v928
        %v961 = vunpack.c.l.b16 %v929
        %v962 = vunpack.c.l.b16 %v930
        %v963 = vpack.c.b16 %v948, %v947
        %v964 = vpack.c.b16 %v950, %v949
        %v965 = vpack.c.b16 %v952, %v951
        %v966 = vpack.c.b16 %v954, %v953
        %v967 = vpack.c.b16 %v956, %v955
        %v968 = vpack.c.b16 %v958, %v957
        %v969 = vpack.c.b16 %v960, %v959
        %v970 = vpack.c.b16 %v962, %v961
        %979 = vmatprep.subr.bf16.mxu0 0
        %980 = vmatpush1.bf16.msra.mxu0 %v963
        %981 = vmatprep.subr.bf16.mxu0 0
        %982 = vmatpush1.bf16.msra.mxu0 %v964
        %983 = vmatprep.subr.bf16.mxu0 0
        %984 = vmatpush1.bf16.msra.mxu0 %v965
        %985 = vmatprep.subr.bf16.mxu0 0
        %986 = vmatpush1.bf16.msra.mxu0 %v966
        %987 = vmatprep.subr.bf16.mxu0 0
        %988 = vmatpush1.bf16.msra.mxu0 %v967
        %989 = vmatprep.subr.bf16.mxu0 0
        %990 = vmatpush1.bf16.msra.mxu0 %v968
        %991 = vmatprep.subr.bf16.mxu0 0
        %992 = vmatpush1.bf16.msra.mxu0 %v969
        %993 = vmatprep.subr.bf16.mxu0 0
        %994 = vmatpush1.bf16.msra.mxu0 %v970
        %995 = vmatprep.subr.bf16.mxu0 0
        %996 = vmatpush1.bf16.msra.mxu0 0
        %997 = vmatprep.subr.bf16.mxu0 0
        %998 = vmatpush1.bf16.msra.mxu0 0
        %999 = vmatprep.subr.bf16.mxu0 0
        %1000 = vmatpush1.bf16.msra.mxu0 0
        %1001 = vmatprep.subr.bf16.mxu0 0
        %1002 = vmatpush1.bf16.msra.mxu0 0
        %1003 = vmatprep.subr.bf16.mxu0 0
        %1004 = vmatpush1.bf16.msra.mxu0 0
        %1005 = vmatprep.subr.bf16.mxu0 0
        %1006 = vmatpush1.bf16.msra.mxu0 0
        %1007 = vmatprep.subr.bf16.mxu0 0
        %1008 = vmatpush1.bf16.msra.mxu0 0
        %1009 = vmatprep.subr.bf16.mxu0 0
        %1010 = vmatpush1.bf16.msra.mxu0 0
        %1011 = vmatprep.mubr.bf16.mxu0 0
        %1012 = vmatmul.mubr.bf16.gmra.mrb[0].mxu0 %v913
        %v1013 = vpop.f32.mrb[0].mxu0
        %v1014 = vadd.f32 0.0, %v1013
        %v1015 = vpop.f32.mrb[0].mxu0
        %v1016 = vpop.f32.mrb[0].mxu0
        %v1017 = vpop.f32.mrb[0].mxu0
        %1018 = vdwg.mxu0
        %v1019 = vmul.f32 %v910, 0.6666667
        %v1020 = vmul.f32 %v800, %v1014
        %v1021 = vadd.f32 %v1019, %v1020
        %v1022 = vtanh.pop %v1021
        %s1023 = scalar_lea.vmem %s430, 8 [#allocation13]
        %1024 = vst [vmem:[%s1023] sm:$0xff] %v1021
        %v1025 = vpack.c.bf16 %v1022, %v1022
        %s1026 = scalar_lea.vmem %s437, 4 [#allocation15]
        %1027 = vst [vmem:[%s1026] sm:$0xf] %v1025
        %v1028 = vld [vmem:[%s6] sm:$0xf]
        %v1029 = vld [vmem:[%s6 + $0x4] sm:$0xf]
        %v1030 = vld [vmem:[%s6 + $0x8] sm:$0xf]
        %v1031 = vld [vmem:[%s6 + $0xc] sm:$0xf]
        %v1032 = vld [vmem:[%s6 + $0x10] sm:$0xf]
        %v1033 = vld [vmem:[%s6 + $0x14] sm:$0xf]
        %v1034 = vld [vmem:[%s6 + $0x18] sm:$0xf]
        %v1035 = vld [vmem:[%s6 + $0x1c] sm:$0xf]
        %v1036 = vld [vmem:[%s6 + $0x20] sm:$0xf]
        %v1037 = vld [vmem:[%s6 + $0x24] sm:$0xf]
        %v1038 = vld [vmem:[%s6 + $0x28] sm:$0xf]
        %v1039 = vld [vmem:[%s6 + $0x2c] sm:$0xf]
        %v1040 = vld [vmem:[%s6 + $0x30] sm:$0xf]
        %v1041 = vld [vmem:[%s6 + $0x34] sm:$0xf]
        %v1042 = vld [vmem:[%s6 + $0x38] sm:$0xf]
        %v1043 = vld [vmem:[%s6 + $0x3c] sm:$0xf]
        %v1060 = vunpack.c.l.b16 %v1028
        %v1061 = vunpack.c.l.b16 %v1029
        %v1062 = vunpack.c.l.b16 %v1030
        %v1063 = vunpack.c.l.b16 %v1031
        %v1064 = vunpack.c.l.b16 %v1032
        %v1065 = vunpack.c.l.b16 %v1033
        %v1066 = vunpack.c.l.b16 %v1034
        %v1067 = vunpack.c.l.b16 %v1035
        %v1068 = vunpack.c.l.b16 %v1036
        %v1069 = vunpack.c.l.b16 %v1037
        %v1070 = vunpack.c.l.b16 %v1038
        %v1071 = vunpack.c.l.b16 %v1039
        %v1072 = vunpack.c.l.b16 %v1040
        %v1073 = vunpack.c.l.b16 %v1041
        %v1074 = vunpack.c.l.b16 %v1042
        %v1075 = vunpack.c.l.b16 %v1043
        %v1076 = vpack.c.b16 %v1061, %v1060
        %v1077 = vpack.c.b16 %v1063, %v1062
        %v1078 = vpack.c.b16 %v1065, %v1064
        %v1079 = vpack.c.b16 %v1067, %v1066
        %v1080 = vpack.c.b16 %v1069, %v1068
        %v1081 = vpack.c.b16 %v1071, %v1070
        %v1082 = vpack.c.b16 %v1073, %v1072
        %v1083 = vpack.c.b16 %v1075, %v1074
        %1092 = vmatprep.subr.bf16.mxu0 0
        %1093 = vmatpush1.bf16.msra.mxu0 %v1076
        %1094 = vmatprep.subr.bf16.mxu0 0
        %1095 = vmatpush1.bf16.msra.mxu0 %v1077
        %1096 = vmatprep.subr.bf16.mxu0 0
        %1097 = vmatpush1.bf16.msra.mxu0 %v1078
        %1098 = vmatprep.subr.bf16.mxu0 0
        %1099 = vmatpush1.bf16.msra.mxu0 %v1079
        %1100 = vmatprep.subr.bf16.mxu0 0
        %1101 = vmatpush1.bf16.msra.mxu0 %v1080
        %1102 = vmatprep.subr.bf16.mxu0 0
        %1103 = vmatpush1.bf16.msra.mxu0 %v1081
        %1104 = vmatprep.subr.bf16.mxu0 0
        %1105 = vmatpush1.bf16.msra.mxu0 %v1082
        %1106 = vmatprep.subr.bf16.mxu0 0
        %1107 = vmatpush1.bf16.msra.mxu0 %v1083
        %1108 = vmatprep.subr.bf16.mxu0 0
        %1109 = vmatpush1.bf16.msra.mxu0 0
        %1110 = vmatprep.subr.bf16.mxu0 0
        %1111 = vmatpush1.bf16.msra.mxu0 0
        %1112 = vmatprep.subr.bf16.mxu0 0
        %1113 = vmatpush1.bf16.msra.mxu0 0
        %1114 = vmatprep.subr.bf16.mxu0 0
        %1115 = vmatpush1.bf16.msra.mxu0 0
        %1116 = vmatprep.subr.bf16.mxu0 0
        %1117 = vmatpush1.bf16.msra.mxu0 0
        %1118 = vmatprep.subr.bf16.mxu0 0
        %1119 = vmatpush1.bf16.msra.mxu0 0
        %1120 = vmatprep.subr.bf16.mxu0 0
        %1121 = vmatpush1.bf16.msra.mxu0 0
        %1122 = vmatprep.subr.bf16.mxu0 0
        %1123 = vmatpush1.bf16.msra.mxu0 0
        %1124 = vmatprep.mubr.bf16.mxu0 0
        %1125 = vmatmul.mubr.bf16.gmra.mrb[0].mxu0 %v1025
        %v1126 = vpop.f32.mrb[0].mxu0
        %v1127 = vadd.f32 0.0, %v1126
        %v1128 = vpop.f32.mrb[0].mxu0
        %v1129 = vpop.f32.mrb[0].mxu0
        %v1130 = vpop.f32.mrb[0].mxu0
        %1131 = vdwg.mxu0
        %v1132 = vmul.f32 %v1021, 0.6666667
        %v1133 = vmul.f32 %v800, %v1127
        %v1134 = vadd.f32 %v1132, %v1133
        %v1135 = vtanh.pop %v1134
        %s1136 = scalar_lea.vmem %s430, 16 [#allocation13]
        %1137 = vst [vmem:[%s1136] sm:$0xff] %v1134
        %v1138 = vpack.c.bf16 %v1135, %v1135
        %s1139 = scalar_lea.vmem %s437, 8 [#allocation15]
        %1140 = vst [vmem:[%s1139] sm:$0xf] %v1138
        %v1141 = vld [vmem:[%s6] sm:$0xf]
        %v1142 = vld [vmem:[%s6 + $0x4] sm:$0xf]
        %v1143 = vld [vmem:[%s6 + $0x8] sm:$0xf]
        %v1144 = vld [vmem:[%s6 + $0xc] sm:$0xf]
        %v1145 = vld [vmem:[%s6 + $0x10] sm:$0xf]
        %v1146 = vld [vmem:[%s6 + $0x14] sm:$0xf]
        %v1147 = vld [vmem:[%s6 + $0x18] sm:$0xf]
        %v1148 = vld [vmem:[%s6 + $0x1c] sm:$0xf]
        %v1149 = vld [vmem:[%s6 + $0x20] sm:$0xf]
        %v1150 = vld [vmem:[%s6 + $0x24] sm:$0xf]
        %v1151 = vld [vmem:[%s6 + $0x28] sm:$0xf]
        %v1152 = vld [vmem:[%s6 + $0x2c] sm:$0xf]
        %v1153 = vld [vmem:[%s6 + $0x30] sm:$0xf]
        %v1154 = vld [vmem:[%s6 + $0x34] sm:$0xf]
        %v1155 = vld [vmem:[%s6 + $0x38] sm:$0xf]
        %v1156 = vld [vmem:[%s6 + $0x3c] sm:$0xf]
        %v1173 = vunpack.c.l.b16 %v1141
        %v1174 = vunpack.c.l.b16 %v1142
        %v1175 = vunpack.c.l.b16 %v1143
        %v1176 = vunpack.c.l.b16 %v1144
        %v1177 = vunpack.c.l.b16 %v1145
        %v1178 = vunpack.c.l.b16 %v1146
        %v1179 = vunpack.c.l.b16 %v1147
        %v1180 = vunpack.c.l.b16 %v1148
        %v1181 = vunpack.c.l.b16 %v1149
        %v1182 = vunpack.c.l.b16 %v1150
        %v1183 = vunpack.c.l.b16 %v1151
        %v1184 = vunpack.c.l.b16 %v1152
        %v1185 = vunpack.c.l.b16 %v1153
        %v1186 = vunpack.c.l.b16 %v1154
        %v1187 = vunpack.c.l.b16 %v1155
        %v1188 = vunpack.c.l.b16 %v1156
        %v1189 = vpack.c.b16 %v1174, %v1173
        %v1190 = vpack.c.b16 %v1176, %v1175
        %v1191 = vpack.c.b16 %v1178, %v1177
        %v1192 = vpack.c.b16 %v1180, %v1179
        %v1193 = vpack.c.b16 %v1182, %v1181
        %v1194 = vpack.c.b16 %v1184, %v1183
        %v1195 = vpack.c.b16 %v1186, %v1185
        %v1196 = vpack.c.b16 %v1188, %v1187
        %1205 = vmatprep.subr.bf16.mxu0 0
        %1206 = vmatpush1.bf16.msra.mxu0 %v1189
        %1207 = vmatprep.subr.bf16.mxu0 0
        %1208 = vmatpush1.bf16.msra.mxu0 %v1190
        %1209 = vmatprep.subr.bf16.mxu0 0
        %1210 = vmatpush1.bf16.msra.mxu0 %v1191
        %1211 = vmatprep.subr.bf16.mxu0 0
        %1212 = vmatpush1.bf16.msra.mxu0 %v1192
        %1213 = vmatprep.subr.bf16.mxu0 0
        %1214 = vmatpush1.bf16.msra.mxu0 %v1193
        %1215 = vmatprep.subr.bf16.mxu0 0
        %1216 = vmatpush1.bf16.msra.mxu0 %v1194
        %1217 = vmatprep.subr.bf16.mxu0 0
        %1218 = vmatpush1.bf16.msra.mxu0 %v1195
        %1219 = vmatprep.subr.bf16.mxu0 0
        %1220 = vmatpush1.bf16.msra.mxu0 %v1196
        %1221 = vmatprep.subr.bf16.mxu0 0
        %1222 = vmatpush1.bf16.msra.mxu0 0
        %1223 = vmatprep.subr.bf16.mxu0 0
        %1224 = vmatpush1.bf16.msra.mxu0 0
        %1225 = vmatprep.subr.bf16.mxu0 0
        %1226 = vmatpush1.bf16.msra.mxu0 0
        %1227 = vmatprep.subr.bf16.mxu0 0
        %1228 = vmatpush1.bf16.msra.mxu0 0
        %1229 = vmatprep.subr.bf16.mxu0 0
        %1230 = vmatpush1.bf16.msra.mxu0 0
        %1231 = vmatprep.subr.bf16.mxu0 0
        %1232 = vmatpush1.bf16.msra.mxu0 0
        %1233 = vmatprep.subr.bf16.mxu0 0
        %1234 = vmatpush1.bf16.msra.mxu0 0
        %1235 = vmatprep.subr.bf16.mxu0 0
        %1236 = vmatpush1.bf16.msra.mxu0 0
        %1237 = vmatprep.mubr.bf16.mxu0 0
        %1238 = vmatmul.mubr.bf16.gmra.mrb[0].mxu0 %v1138
        %v1239 = vpop.f32.mrb[0].mxu0
        %v1240 = vadd.f32 0.0, %v1239
        %v1241 = vpop.f32.mrb[0].mxu0
        %v1242 = vpop.f32.mrb[0].mxu0
        %v1243 = vpop.f32.mrb[0].mxu0
        %1244 = vdwg.mxu0
        %v1245 = vmul.f32 %v1134, 0.6666667
        %v1246 = vmul.f32 %v800, %v1240
        %v1247 = vadd.f32 %v1245, %v1246
        %v1248 = vtanh.pop %v1247
        %s1249 = scalar_lea.vmem %s430, 24 [#allocation13]
        %1250 = vst [vmem:[%s1249] sm:$0xff] %v1247
        %v1251 = vpack.c.bf16 %v1248, %v1248
        %s1252 = scalar_lea.vmem %s437, 12 [#allocation15]
        %1253 = vst [vmem:[%s1252] sm:$0xf] %v1251
        %1254 = vst [vmem:[#allocation2] sm:$0xff] %v1247
        %1255 = vst [vmem:[#allocation3] sm:$0xff] %v1248
        %s1256 = sand.u32 %s228, 1
        %s1257 = scalar_lea.sflag [#allocation8], %s1256
        %s1258 = sand.u32 %s228, 1
        %s1259 = smul.addr %s1258, 8
        %s1260 = scalar_lea.vmem [#allocation12], %s1259
        %s1261 = sand.u32 %s30, 1
        %s1262 = scalar_lea.sflag [#allocation14], %s1261
        %s1263 = sand.u32 %s256, 1
        %s1264 = smul.addr %s1263, 32
        %s1265 = scalar_lea.vmem [#allocation13], %s1264
        %s1266 = sand.u32 %s30, 1
        %s1267 = scalar_lea.sflag [#allocation14], %s1266
        %s1268 = sand.u32 %s284, 1
        %s1269 = smul.addr %s1268, 16
        %s1270 = scalar_lea.vmem [#allocation15], %s1269
        // Predicated region
        $region69: #{tpu_custom_call.1} parent=51 // pred_check
          %p1271 = pneg %p238
        $region70: #{tpu_custom_call.1} parent=51 // pred_check_branch
          %1273 = sbr.rel (%p1271) target = $region72
        $region71: #{tpu_custom_call.1} parent=51 // pred_region
          %s1275 = ssub.s32 128, 128
          %1276 = vsyncadd %s1257, %s1275
          %s1277 = smul.addr %s34, 128
          %s1278 = scalar_lea.hbm %s8, %s1277
          %s1280 = sshll.u32 %s1260, 4
          %s1281 = int_to_ptr.vmem [resolvable:$true] %s1280
          %1283 = dma.vmem_to_hbm [thread:$0]  %s1281, 128, %s1278, %s1257
        $region72: #{tpu_custom_call.1} parent=51 // pred_fallthru
          _
        // Predicated region
        $region73: #{tpu_custom_call.1} parent=51 // pred_check
          %p1284 = pneg %p266
        $region74: #{tpu_custom_call.1} parent=51 // pred_check_branch
          %1286 = sbr.rel (%p1284) target = $region76
        $region75: #{tpu_custom_call.1} parent=51 // pred_region
          %s1287 = smul.u32 4, %s35
          %s1289 = ssub.s32 512, 512
          %1290 = vsyncadd %s1262, %s1289
          %s1291 = smul.addr %s1287, 2
          %s1292 = sadd.s32 %s34, %s1291
          %s1293 = smul.addr %s1292, 128
          %s1294 = scalar_lea.hbm %s9, %s1293
          %s1295 = sshll.u32 %s1265, 4
          %s1296 = int_to_ptr.vmem [resolvable:$true] %s1295
          %1301 = dma.vmem_to_hbm [thread:$0]  %s1296, 512, %s1294, %s1262, 128, 256, 8
        $region76: #{tpu_custom_call.1} parent=51 // pred_fallthru
          _
        // Predicated region
        $region77: #{tpu_custom_call.1} parent=51 // pred_check
          %p1302 = pneg %p294
        $region78: #{tpu_custom_call.1} parent=51 // pred_check_branch
          %1304 = sbr.rel (%p1302) target = $region80
        $region79: #{tpu_custom_call.1} parent=51 // pred_region
          %s1305 = smul.u32 4, %s35
          %s1307 = ssub.s32 256, 256
          %1308 = vsyncadd %s1267, %s1307
          %s1309 = smul.addr %s1305, 2
          %s1310 = sadd.s32 %s34, %s1309
          %s1311 = smul.addr %s1310, 64
          %s1312 = scalar_lea.hbm %s10, %s1311
          %s1313 = sshll.u32 %s1270, 4
          %s1314 = int_to_ptr.vmem [resolvable:$true] %s1313
          %1319 = dma.vmem_to_hbm [thread:$0]  %s1314, 256, %s1312, %s1267, 64, 128, 4
        $region80: #{tpu_custom_call.1} parent=51 // pred_fallthru
          _
      $region52: #{tpu_custom_call.1} parent=5 // pred_fallthru
        _
      %p1320 = scmp.le.s32.totalorder 2, %s25
      // Predicated region
      $region81: #{tpu_custom_call.1} parent=5 // pred_check
        %p1321 = pneg %p1320
      $region82: #{tpu_custom_call.1} parent=5 // pred_check_branch
        %1323 = sbr.rel (%p1321) target = $region84
      $region83: #{tpu_custom_call.1} parent=5 // pred_region
        %s1324 = ssub.s32 %s25, 2
        // Predicated region
        $region85: #{tpu_custom_call.1} parent=83 // pred_check
          %p1325 = pneg %p244
        $region86: #{tpu_custom_call.1} parent=83 // pred_check_branch
          %1327 = sbr.rel (%p1325) target = $region88
        $region87: #{tpu_custom_call.1} parent=83 // pred_region
          %s1328 = sand.u32 %s229, 1
          %s1329 = scalar_lea.sflag [#allocation8], %s1328
          %s1330 = sand.u32 %s229, 1
          %s1331 = smul.addr %s1330, 8
          %s1332 = scalar_lea.vmem [#allocation12], %s1331
          %1333 = dma.done %s1329, 128
        $region88: #{tpu_custom_call.1} parent=83 // pred_fallthru
          _
        // Predicated region
        $region89: #{tpu_custom_call.1} parent=83 // pred_check
          %p1334 = pneg %p272
        $region90: #{tpu_custom_call.1} parent=83 // pred_check_branch
          %1336 = sbr.rel (%p1334) target = $region92
        $region91: #{tpu_custom_call.1} parent=83 // pred_region
          %s1337 = sand.u32 %s31, 1
          %s1338 = scalar_lea.sflag [#allocation14], %s1337
          %s1339 = sand.u32 %s257, 1
          %s1340 = smul.addr %s1339, 32
          %s1341 = scalar_lea.vmem [#allocation13], %s1340
          %1342 = dma.done %s1338, 512
        $region92: #{tpu_custom_call.1} parent=83 // pred_fallthru
          _
        // Predicated region
        $region93: #{tpu_custom_call.1} parent=83 // pred_check
          %p1343 = pneg %p300
        $region94: #{tpu_custom_call.1} parent=83 // pred_check_branch
          %1345 = sbr.rel (%p1343) target = $region96
        $region95: #{tpu_custom_call.1} parent=83 // pred_region
          %s1346 = sand.u32 %s31, 1
          %s1347 = scalar_lea.sflag [#allocation14], %s1346
          %s1348 = sand.u32 %s285, 1
          %s1349 = smul.addr %s1348, 16
          %s1350 = scalar_lea.vmem [#allocation15], %s1349
          %1351 = dma.done %s1347, 256
        $region96: #{tpu_custom_call.1} parent=83 // pred_fallthru
          _
      $region84: #{tpu_custom_call.1} parent=5 // pred_fallthru
        _
    $region6: #{tpu_custom_call.1} parent=1 // loop_footer
      %s29 = sadd.s32 1, %s25
    $region7: #{tpu_custom_call.1} parent=1 // loop_footer_branch
      %24 = sbr.rel target = $region3
    $region8: #{tpu_custom_call.1} parent=1 // loop_exit
      _
    %1352 = vsyncpa [#allocation7], 1
    %s1353 = scalar_lea.sflag [#allocation7], 1
    %1354 = vsyncpa %s1353, 1
    %1355 = vsyncpa [#allocation10], 1
    %1356 = vsyncpa [#allocation8], 1
    %s1357 = scalar_lea.sflag [#allocation8], 1
    %1358 = vsyncpa %s1357, 1
    %1359 = vsyncpa [#allocation14], 1
    %s1360 = scalar_lea.sflag [#allocation14], 1
    %1361 = vsyncpa %s1360, 1

</llo_original>
